<compile_context>
chip_gen: v7x
topology: tpu7x:2x2x1
jax: 0.10.0
libtpu: 0.0.40
codegen_flags: <defaults>
</compile_context>

<pallas_src>
import jax
import jax.numpy as jnp
from jax.experimental import pallas as pl
from jax.experimental.pallas import tpu as pltpu


def _round_up(x: int, m: int) -> int:
    return ((x + m - 1) // m) * m


def _pick_lane_tile(dim_padded: int, max_tile: int) -> int:
    """Largest 128-multiple tile <= max_tile that divides the 128-padded dim."""
    t = max(128, (min(max_tile, dim_padded) // 128) * 128)
    while t > 128 and dim_padded % t != 0:
        t -= 128
    return t


def _linear_kernel(x_ref, w_ref, b_ref, o_ref, acc_ref):
    # x_ref: (TM, TK) bf16     w_ref: (TK, TN) bf16 (weight pre-transposed to [K, N])
    # b_ref: (1, TN) f32       o_ref: (TM, TN) out dtype   acc_ref: (TM, TN) f32
    k = pl.program_id(2)

    @pl.when(k == 0)
    def _():
        acc_ref[...] = jnp.zeros_like(acc_ref)

    # MXU-native layout: K on sublanes of w, N on lanes -> pure vmatmul inner loop.
    acc_ref[...] += jnp.dot(x_ref[...], w_ref[...],
                            preferred_element_type=jnp.float32)

    @pl.when(k == pl.num_programs(2) - 1)
    def _():
        o_ref[...] = (acc_ref[...] + b_ref[...]).astype(o_ref.dtype)


def prepare_params(weight: jax.Array, bias=None, compute_dtype=jnp.bfloat16):
    """One-time parameter prep (amortized across calls): transpose the PyTorch
    [out, in] weight to MXU-native [in, out], pad lane dims to 128, cast to bf16."""
    out_features, in_features = weight.shape
    k_pad = _round_up(in_features, 128)
    n_pad = _round_up(out_features, 128)

    w_kn = weight.T  # [K, N]
    if (k_pad, n_pad) != (in_features, out_features):
        w_kn = jnp.pad(w_kn, ((0, k_pad - in_features), (0, n_pad - out_features)))
    w_kn = w_kn.astype(compute_dtype)

    if bias is None:
        b_row = jnp.zeros((1, n_pad), jnp.float32)
    else:
        b_row = bias.reshape(1, -1).astype(jnp.float32)
        if n_pad != out_features:
            b_row = jnp.pad(b_row, ((0, 0), (0, n_pad - out_features)))

    return {"w_kn": w_kn, "b_row": b_row,
            "in_features": in_features, "out_features": out_features}


def normal_layer_apply(x: jax.Array, params) -> jax.Array:
    """y = x @ W.T + b using the pre-prepared (transposed/padded/bf16) weight."""
    w_kn, b_row = params["w_kn"], params["b_row"]
    in_features, out_features = params["in_features"], params["out_features"]
    k_pad, n_pad = w_kn.shape
    compute_dtype = w_kn.dtype

    orig_shape = x.shape
    out_dtype = x.dtype           # accumulate f32, write back in the input dtype
    x2 = x.reshape(-1, in_features)
    m = x2.shape[0]

    # ---- tile selection ----------------------------------------------------
    tk = _pick_lane_tile(k_pad, 1024)                 # lane-dense K strips
    tn = _pick_lane_tile(n_pad, 512)                  # lane-dense output tiles
    tm = min(512 if m >= 512 else 256, _round_up(m, 16))   # bf16: 2 rows / sublane
    m_pad = _round_up(m, tm)

    # v7x megacore: expose >= 2 blocks along a "parallel" axis for decode-ish M.
    if m_pad // tm == 1 and n_pad // tn == 1 and tn >= 256:
        tn = _pick_lane_tile(n_pad, tn // 2)

    # ---- per-call input prep (weight/bias already prepped) ------------------
    x2 = x2.astype(compute_dtype)
    if (m_pad, k_pad) != (m, in_features):
        x2 = jnp.pad(x2, ((0, m_pad - m), (0, k_pad - in_features)))

    grid = (m_pad // tm, n_pad // tn, k_pad // tk)

    in_itemsize = jnp.dtype(compute_dtype).itemsize
    out_itemsize = jnp.dtype(out_dtype).itemsize
    vmem_bytes = (2 * tm * tk * in_itemsize        # x double buffer
                  + 2 * tk * tn * in_itemsize      # w double buffer
                  + 2 * tm * tn * out_itemsize     # out double buffer
                  + tm * tn * 4                    # f32 accumulator
                  + 2 * tn * 4)                    # bias
    # Explicit limit: above v5e's 16 MiB scoped default, below v7x's 64 MiB physical.
    vmem_limit = int(min(48 * 1024 * 1024, max(32 * 1024 * 1024, 2 * vmem_bytes)))

    cost = pl.CostEstimate(
        flops=2 * m_pad * n_pad * k_pad,
        transcendentals=0,
        bytes_accessed=(m_pad * k_pad * in_itemsize
                        + k_pad * n_pad * in_itemsize
                        + m_pad * n_pad * out_itemsize
                        + n_pad * 4),
    )

    out = pl.pallas_call(
        _linear_kernel,
        out_shape=jax.ShapeDtypeStruct((m_pad, n_pad), out_dtype),
        grid=grid,
        in_specs=[
            pl.BlockSpec((tm, tk), lambda i, j, k: (i, k)),   # x tile
            pl.BlockSpec((tk, tn), lambda i, j, k: (k, j)),   # weight tile, [K, N] layout
            pl.BlockSpec((1, tn), lambda i, j, k: (0, j)),    # bias row (used at k==last)
        ],
        out_specs=pl.BlockSpec((tm, tn), lambda i, j, k: (i, j)),
        scratch_shapes=[pltpu.VMEM((tm, tn), jnp.float32)],
        compiler_params=pltpu.CompilerParams(
            dimension_semantics=("parallel", "parallel", "arbitrary"),
            vmem_limit_bytes=vmem_limit,
        ),
        cost_estimate=cost,
    )(x2, w_kn, b_row)

    out = out[:m, :out_features]
    return out.reshape(*orig_shape[:-1], out_features)


def normal_layer(x: jax.Array, weight: jax.Array, bias=None) -> jax.Array:
    """Convenience one-shot entry point (same semantics as torch.nn.Linear)."""
    out_features, in_features = weight.shape
    # Small-problem fast path: pad/tile/pipeline machinery costs more than the matmul.
    if in_features < 256 and out_features < 256:
        y = jnp.dot(x, weight.T)
        if bias is not None:
            y = y + bias
        return y.astype(x.dtype)
    return normal_layer_apply(x, prepare_params(weight, bias))


if __name__ == "__main__":
    key = jax.random.PRNGKey(0)

    # --- Case 1: tiny demo shapes (32x32) -> small-problem fast path ---------
    in_f, out_f, batch = 32, 32, 8
    k1, k2, k3, key = jax.random.split(key, 4)
    bound = 1.0 / (in_f ** 0.5)
    w_s = jax.random.uniform(k2, (out_f, in_f), jnp.float32, -bound, bound)
    b_s = jax.random.uniform(k3, (out_f,), jnp.float32, -bound, bound)
    x_s = jax.random.normal(k1, (batch, in_f), jnp.float32)
    y_s = jax.block_until_ready(normal_layer(x_s, w_s, b_s))
    ref_s = x_s @ w_s.T + b_s
    assert y_s.shape == (batch, out_f)
    assert jnp.allclose(y_s, ref_s, atol=1e-5, rtol=1e-5)

    # --- Case 2: kernel-sized shapes -> Pallas path (bf16 MXU, f32 acc) ------
    in_f, out_f, batch = 512, 512, 240
    k1, k2, k3, key = jax.random.split(key, 4)
    bound = 1.0 / (in_f ** 0.5)
    weight = jax.random.uniform(k2, (out_f, in_f), jnp.float32, -bound, bound)
    bias = jax.random.uniform(k3, (out_f,), jnp.float32, -bound, bound)
    x = jax.random.normal(k1, (batch, in_f), jnp.float32)

    params = prepare_params(weight, bias)      # one-time transpose/pad/bf16 cast
    y = jax.block_until_ready(normal_layer_apply(x, params))

    y_ref = x @ weight.T + bias                # f32 reference
    assert y.shape == (batch, out_f)
    err = float(jnp.max(jnp.abs(y - y_ref)))
    # bf16 operands with f32 accumulation over K=512 -> ~1e-2 worst-case error.
    assert err < 5e-2, f"max abs err {err}"

    print("KERNEL_OK")
</pallas_src>

<mosaic_0001>
module attributes {stable_mosaic.version = 11 : i64} {
  func.func @_linear_kernel(%arg0: i32, %arg1: i32, %arg2: i32, %arg3: memref<240x512xbf16, #tpu.memory_space<vmem>>, %arg4: memref<512x256xbf16, #tpu.memory_space<vmem>>, %arg5: memref<1x256xf32, #tpu.memory_space<vmem>>, %arg6: memref<240x256xf32, #tpu.memory_space<vmem>>, %arg7: memref<240x256xf32, #tpu.memory_space<vmem>>) attributes {dimension_semantics = [#tpu.dimension_semantics<parallel>, #tpu.dimension_semantics<parallel>, #tpu.dimension_semantics<arbitrary>], iteration_bounds = array<i64: 1, 2, 1>, scalar_prefetch = 0 : i64, scratch_operands = 1 : i64, tpu.core_type = #tpu.core_type<tc>, window_params = [{transform_indices = @transform_0, window_bounds = array<i64: 240, 512>}, {transform_indices = @transform_1, window_bounds = array<i64: 512, 256>}, {transform_indices = @transform_2, window_bounds = array<i64: 1, 256>}, {transform_indices = @transform_3, window_bounds = array<i64: 240, 256>}]} {
    %c0_i32 = arith.constant 0 : i32
    %0 = arith.cmpi eq, %arg2, %c0_i32 : i32
    %1 = arith.extui %0 : i1 to i32
    %c0_i32_0 = arith.constant 0 : i32
    %2 = arith.cmpi ne, %1, %c0_i32_0 : i32
    scf.if %2 {
      %cst_10 = arith.constant 0.000000e+00 : f32
      %12 = vector.broadcast %cst_10 : f32 to vector<240x256xf32>
      %c0_11 = arith.constant 0 : index
      %c0_12 = arith.constant 0 : index
      %13 = vector.load %arg7[%c0_11, %c0_12] : memref<240x256xf32, #tpu.memory_space<vmem>>, vector<240x256xf32>
      tpu.vector_store %arg7[%c0_11, %c0_12], %12 {strides = array<i32>} : memref<240x256xf32, #tpu.memory_space<vmem>>, vector<240x256xf32>,
    } else {
    }
    %c0 = arith.constant 0 : index
    %c0_1 = arith.constant 0 : index
    %3 = vector.load %arg7[%c0, %c0_1] : memref<240x256xf32, #tpu.memory_space<vmem>>, vector<240x256xf32>
    %c0_2 = arith.constant 0 : index
    %c0_3 = arith.constant 0 : index
    %4 = vector.load %arg3[%c0_2, %c0_3] : memref<240x512xbf16, #tpu.memory_space<vmem>>, vector<240x512xbf16>
    %c0_4 = arith.constant 0 : index
    %c0_5 = arith.constant 0 : index
    %5 = vector.load %arg4[%c0_4, %c0_5] : memref<512x256xbf16, #tpu.memory_space<vmem>>, vector<512x256xbf16>
    %cst = arith.constant dense<0.000000e+00> : vector<240x256xf32>
    %6 = tpu.matmul %4, %5, %cst {dimension_numbers = #tpu.dot_dimension_numbers<[1], [0], [0], [1], [0, 0, 1, 1], [], []>} : vector<240x512xbf16>, vector<512x256xbf16>, vector<240x256xf32> -> vector<240x256xf32>
    %7 = arith.addf %3, %6 : vector<240x256xf32>
    %c0_6 = arith.constant 0 : index
    %c0_7 = arith.constant 0 : index
    %8 = vector.load %arg7[%c0_6, %c0_7] : memref<240x256xf32, #tpu.memory_space<vmem>>, vector<240x256xf32>
    tpu.vector_store %arg7[%c0_6, %c0_7], %7 {strides = array<i32>} : memref<240x256xf32, #tpu.memory_space<vmem>>, vector<240x256xf32>,
    %c0_i32_8 = arith.constant 0 : i32
    %9 = arith.cmpi eq, %arg2, %c0_i32_8 : i32
    %10 = arith.extui %9 : i1 to i32
    %c0_i32_9 = arith.constant 0 : i32
    %11 = arith.cmpi ne, %10, %c0_i32_9 : i32
    scf.if %11 {
      %c0_10 = arith.constant 0 : index
      %c0_11 = arith.constant 0 : index
      %12 = vector.load %arg7[%c0_10, %c0_11] : memref<240x256xf32, #tpu.memory_space<vmem>>, vector<240x256xf32>
      %c0_12 = arith.constant 0 : index
      %c0_13 = arith.constant 0 : index
      %13 = vector.load %arg5[%c0_12, %c0_13] : memref<1x256xf32, #tpu.memory_space<vmem>>, vector<1x256xf32>
      %14 = vector.broadcast %13 : vector<1x256xf32> to vector<240x256xf32>
      %15 = arith.addf %12, %14 : vector<240x256xf32>
      %c0_14 = arith.constant 0 : index
      %c0_15 = arith.constant 0 : index
      %16 = vector.load %arg6[%c0_14, %c0_15] : memref<240x256xf32, #tpu.memory_space<vmem>>, vector<240x256xf32>
      tpu.vector_store %arg6[%c0_14, %c0_15], %15 {strides = array<i32>} : memref<240x256xf32, #tpu.memory_space<vmem>>, vector<240x256xf32>,
    } else {
    }
    return
  }
  func.func @transform_0(%arg0: i32, %arg1: i32, %arg2: i32) -> (i32, i32) {
    %c0_i32 = arith.constant 0 : i32
    return %arg0, %arg2 : i32, i32
  }
  func.func @transform_1(%arg0: i32, %arg1: i32, %arg2: i32) -> (i32, i32) {
    %c0_i32 = arith.constant 0 : i32
    return %arg2, %arg1 : i32, i32
  }
  func.func @transform_2(%arg0: i32, %arg1: i32, %arg2: i32) -> (i32, i32) {
    %c0_i32 = arith.constant 0 : i32
    %c0_i32_0 = arith.constant 0 : i32
    return %c0_i32, %arg1 : i32, i32
  }
  func.func @transform_3(%arg0: i32, %arg1: i32, %arg2: i32) -> (i32, i32) {
    %c0_i32 = arith.constant 0 : i32
    return %arg0, %arg1 : i32, i32
  }
}

</mosaic_0001>

<llo_original>
// kernel: tpu_custom_call.1
$region0: #{tpu_custom_call.1}
  #allocation0 [shape = 'u32[]', space=smem, size = 0x4, offset = 0x4, fixed_abs, tag = 'smem constant byte address 0x4 - core index']
  #allocation1 [shape = 'u32[144,128]{1,0:T(1,128)}', space=vmem, size = 0x12000, scoped, tag = 'internal scratch']
  #allocation2 [shape = 'f32[240,256]{1,0:T(8,128)}', space=vmem, size = 0x3c000, scoped, tag = 'scratch operand']
  %s0 = inlined_call_operand.hbm [shape: bf16[240,512], index: 0, kind: input, shape index: {}]
  %s1 = inlined_call_operand.hbm [shape: bf16[512,512], index: 1, kind: input, shape index: {}]
  %s2 = inlined_call_operand.vmem [shape: f32[1,512], index: 2, kind: input, shape index: {}]
  %s3 = inlined_call_operand.hbm [shape: f32[240,512], index: 3, kind: output, shape index: {}]
  %s4 = sld [smem:[#allocation0]]
  $region61: #{tpu_custom_call.1} parent=0
    _
  %s6 = ssub.s32 1, %s4
  %s7 = scalar_select 0, %s6, %s4
  $region1: #{tpu_custom_call.1} parent=0
    #allocation3 [shape = 'u8[245760]{0}', space=vmem, size = 0x3c000, scoped, tag = 'input window, operand 0, single buffered']
    #allocation4 [shape = 's32[2]{0}', space=sflag, size = 0x8, scoped, tag = 'scoped memory for tpu_custom_call.1']
    #allocation5 [shape = 's32[2]{0}', space=sflag, size = 0x8, scoped, tag = 'scoped memory for tpu_custom_call.1']
    #allocation6 [shape = 'u8[524288]{0}', space=vmem, size = 0x80000, scoped, tag = 'input window, operand 1']
    #allocation7 [shape = 's32[2]{0}', space=sflag, size = 0x8, scoped, tag = 'scoped memory for tpu_custom_call.1']
    #allocation8 [shape = 'u8[491520]{0}', space=vmem, size = 0x78000, scoped, tag = 'output window, operand 0']
    %8 = vsyncpa [#allocation4], 0
    %9 = vsyncpa [#allocation7], 0
    %s10 = scalar_lea.sflag [#allocation7], 1
    %11 = vsyncpa %s10, 0
    %12 = vsyncpa [#allocation5], 0
    %s13 = scalar_lea.sflag [#allocation5], 1
    %14 = vsyncpa %s13, 0
    loop: start=0, step=1, limit=4
    $region2: #{tpu_custom_call.1} parent=1 // loop_pre_header
      _
    $region3: #{tpu_custom_call.1} parent=1 // loop_header
      %s16 = sphi 0, %s20
      %p17 = scmp.ge.s32.totalorder %s16, 4
      %s23 = sphi 0, %s42
      %s24 = sphi 0, %s38
      %s25 = sphi 0, %s34
      %s26 = sphi 0, %s23
      %s27 = sphi 0, %s24
      %s28 = sphi 0, %s25
      %s29 = sphi 0, %s26
      %s30 = sphi 0, %s27
      %s31 = sphi 0, %s28
      %s47 = sphi 0, %s49
      %s50 = sphi 0, %s47
      %s51 = sphi 0, %s50
      %s67 = sphi 0, %s51
      %s75 = sphi 0, %s77
      %s78 = sphi 0, %s75
      %s79 = sphi 0, %s78
      %s95 = sphi 0, %s79
      %s101 = sphi 0, %s103
      %s104 = sphi 0, %s101
      %s105 = sphi 0, %s104
      %s121 = sphi 0, %s105
      %s129 = sphi 0, %s131
      %s132 = sphi 0, %s129
      %s133 = sphi 0, %s132
      %s149 = sphi 0, %s133
    $region4: #{tpu_custom_call.1} parent=1 // loop_header_branch
      %19 = sbr.rel (%p17) target = $region8
    $region5: #{tpu_custom_call.1} parent=1 // loop_body
      %s21 = ssub.s32 %s16, 1
      %s22 = ssub.s32 %s16, 2
      %s32 = sadd.s32 1, %s25
      %p33 = scmp.ge.s32.totalorder %s32, 1
      %s34 = scalar_select %p33, 0, %s32
      %s35 = sadd.s32 1, %s24
      %s36 = scalar_select %p33, %s35, %s24
      %p37 = scmp.ge.s32.totalorder %s36, 2
      %s38 = scalar_select %p37, 0, %s36
      %s39 = sadd.s32 1, %s23
      %s40 = scalar_select %p37, %s39, %s23
      %p41 = scmp.ge.s32.totalorder %s40, 1
      %s42 = scalar_select %p41, 0, %s40
      %s43 = ssub.s32 %s23, %s42
      %s44 = ssub.s32 %s25, %s34
      %s45 = sor.u32 %s43, %s44
      %p46 = scmp.eq.s32.totalorder %s45, 0
      %s48 = sadd.s32 %s47, 1
      %s49 = scalar_select %p46, %s47, %s48
      %p52 = pneg %p46
      %p53 = scmp.eq.s32.totalorder %s16, 1
      %p54 = por %p52, %p53
      %p55 = scmp.ne.s32.totalorder %s47, %s50
      %p56 = scmp.eq.s32.totalorder %s16, 0
      %p57 = por %p55, %p56
      %p58 = scmp.ne.s32.totalorder %s47, %s50
      %p59 = scmp.eq.s32.totalorder %s21, 1
      %p60 = por %p58, %p59
      %p61 = scmp.ne.s32.totalorder %s50, %s51
      %p62 = scmp.eq.s32.totalorder %s21, 0
      %p63 = por %p61, %p62
      %p64 = scmp.ne.s32.totalorder %s50, %s51
      %p65 = scmp.eq.s32.totalorder %s22, 1
      %p66 = por %p64, %p65
      %p68 = scmp.ne.s32.totalorder %s51, %s67
      %p69 = scmp.eq.s32.totalorder %s22, 0
      %p70 = por %p68, %p69
      %s71 = ssub.s32 %s25, %s34
      %s72 = ssub.s32 %s24, %s38
      %s73 = sor.u32 %s71, %s72
      %p74 = scmp.eq.s32.totalorder %s73, 0
      %s76 = sadd.s32 %s75, 1
      %s77 = scalar_select %p74, %s75, %s76
      %p80 = pneg %p74
      %p81 = scmp.eq.s32.totalorder %s16, 1
      %p82 = por %p80, %p81
      %p83 = scmp.ne.s32.totalorder %s75, %s78
      %p84 = scmp.eq.s32.totalorder %s16, 0
      %p85 = por %p83, %p84
      %p86 = scmp.ne.s32.totalorder %s75, %s78
      %p87 = scmp.eq.s32.totalorder %s21, 1
      %p88 = por %p86, %p87
      %p89 = scmp.ne.s32.totalorder %s78, %s79
      %p90 = scmp.eq.s32.totalorder %s21, 0
      %p91 = por %p89, %p90
      %p92 = scmp.ne.s32.totalorder %s78, %s79
      %p93 = scmp.eq.s32.totalorder %s22, 1
      %p94 = por %p92, %p93
      %p96 = scmp.ne.s32.totalorder %s79, %s95
      %p97 = scmp.eq.s32.totalorder %s22, 0
      %p98 = por %p96, %p97
      %s99 = ssub.s32 %s24, %s38
      %p100 = scmp.eq.s32.totalorder %s99, 0
      %s102 = sadd.s32 %s101, 1
      %s103 = scalar_select %p100, %s101, %s102
      %p106 = pneg %p100
      %p107 = scmp.eq.s32.totalorder %s16, 1
      %p108 = por %p106, %p107
      %p109 = scmp.ne.s32.totalorder %s101, %s104
      %p110 = scmp.eq.s32.totalorder %s16, 0
      %p111 = por %p109, %p110
      %p112 = scmp.ne.s32.totalorder %s101, %s104
      %p113 = scmp.eq.s32.totalorder %s21, 1
      %p114 = por %p112, %p113
      %p115 = scmp.ne.s32.totalorder %s104, %s105
      %p116 = scmp.eq.s32.totalorder %s21, 0
      %p117 = por %p115, %p116
      %p118 = scmp.ne.s32.totalorder %s104, %s105
      %p119 = scmp.eq.s32.totalorder %s22, 1
      %p120 = por %p118, %p119
      %p122 = scmp.ne.s32.totalorder %s105, %s121
      %p123 = scmp.eq.s32.totalorder %s22, 0
      %p124 = por %p122, %p123
      %s125 = ssub.s32 %s23, %s42
      %s126 = ssub.s32 %s24, %s38
      %s127 = sor.u32 %s125, %s126
      %p128 = scmp.eq.s32.totalorder %s127, 0
      %s130 = sadd.s32 %s129, 1
      %s131 = scalar_select %p128, %s129, %s130
      %p134 = pneg %p128
      %p135 = scmp.eq.s32.totalorder %s16, 1
      %p136 = por %p134, %p135
      %p137 = scmp.ne.s32.totalorder %s129, %s132
      %p138 = scmp.eq.s32.totalorder %s16, 0
      %p139 = por %p137, %p138
      %p140 = scmp.ne.s32.totalorder %s129, %s132
      %p141 = scmp.eq.s32.totalorder %s21, 1
      %p142 = por %p140, %p141
      %p143 = scmp.ne.s32.totalorder %s132, %s133
      %p144 = scmp.eq.s32.totalorder %s21, 0
      %p145 = por %p143, %p144
      %p146 = scmp.ne.s32.totalorder %s132, %s133
      %p147 = scmp.eq.s32.totalorder %s22, 1
      %p148 = por %p146, %p147
      %p150 = scmp.ne.s32.totalorder %s133, %s149
      %p151 = scmp.eq.s32.totalorder %s22, 0
      %p152 = por %p150, %p151
      %p153 = scmp.le.s32.totalorder 1, %s16
      %p154 = scmp.lt.s32.totalorder %s16, 3
      %p155 = pnand %p153, %p154
      %p156 = pneg %p155
      // Predicated region
      $region9: #{tpu_custom_call.1} parent=5 // pred_check
        _
      $region10: #{tpu_custom_call.1} parent=5 // pred_check_branch
        %158 = sbr.rel (%p155) target = $region12
      $region11: #{tpu_custom_call.1} parent=5 // pred_region
        %s159 = ssub.s32 %s16, 1
        // Predicated region
        $region13: #{tpu_custom_call.1} parent=11 // pred_check
          %p160 = pneg %p63
        $region14: #{tpu_custom_call.1} parent=11 // pred_check_branch
          %162 = sbr.rel (%p160) target = $region16
        $region15: #{tpu_custom_call.1} parent=11 // pred_region
          %s163 = smul.u32 30, %s26
          %s164 = smul.u32 4, %s28
          %s166 = ssub.s32 7680, 7680
          %167 = vsyncadd [#allocation4], %s166
          %s168 = smul.addr %s163, 4
          %s169 = sadd.s32 %s164, %s168
          %s170 = smul.addr %s169, 64
          %s171 = scalar_lea.hbm %s0, %s170
          %s172 = sshll.u32 [#allocation3], 4
          %s173 = int_to_ptr.vmem [resolvable:$true] %s172
          %178 = dma.hbm_to_vmem [thread:$0]  %s171, 7680, %s173, [#allocation4], 256, 256, 16
        $region16: #{tpu_custom_call.1} parent=11 // pred_fallthru
          _
      $region12: #{tpu_custom_call.1} parent=5 // pred_fallthru
        _
      %p179 = scmp.lt.s32.totalorder %s16, 2
      // Predicated region
      $region17: #{tpu_custom_call.1} parent=5 // pred_check
        %p180 = pneg %p179
      $region18: #{tpu_custom_call.1} parent=5 // pred_check_branch
        %182 = sbr.rel (%p180) target = $region20
      $region19: #{tpu_custom_call.1} parent=5 // pred_region
        // Predicated region
        $region21: #{tpu_custom_call.1} parent=19 // pred_check
          %p183 = pneg %p85
        $region22: #{tpu_custom_call.1} parent=19 // pred_check_branch
          %185 = sbr.rel (%p183) target = $region24
        $region23: #{tpu_custom_call.1} parent=19 // pred_region
          %s186 = sand.u32 %s75, 1
          %s187 = scalar_lea.sflag [#allocation7], %s186
          %s188 = sand.u32 %s75, 1
          %s189 = smul.addr %s188, 512
          %s190 = scalar_lea.vmem [#allocation6], %s189
          %s191 = smul.u32 64, %s25
          %s192 = smul.u32 2, %s24
          %s194 = ssub.s32 8192, 8192
          %195 = vsyncadd %s187, %s194
          %s196 = smul.addr %s191, 4
          %s197 = sadd.s32 %s192, %s196
          %s198 = smul.addr %s197, 64
          %s199 = scalar_lea.hbm %s1, %s198
          %s200 = sshll.u32 %s190, 4
          %s201 = int_to_ptr.vmem [resolvable:$true] %s200
          %206 = dma.hbm_to_vmem [thread:$0]  %s199, 8192, %s201, %s187, 256, 128, 8
        $region24: #{tpu_custom_call.1} parent=19 // pred_fallthru
          _
        // Predicated region
        $region25: #{tpu_custom_call.1} parent=19 // pred_check
          %p207 = pneg %p111
        $region26: #{tpu_custom_call.1} parent=19 // pred_check_branch
          %209 = sbr.rel (%p207) target = $region28
        $region27: #{tpu_custom_call.1} parent=19 // pred_region
          %s210 = smul.u32 2, %s24
          %p211 = scmp.lt.s32.totalorder %s210, 3
          %s212 = scalar_select %p211, %s210, 3
          %s213 = scalar_lea.vmem %s2, %s212
          %s214 = smul.u32 2, %s24
        $region28: #{tpu_custom_call.1} parent=19 // pred_fallthru
          _
      $region20: #{tpu_custom_call.1} parent=5 // pred_fallthru
        _
      %p215 = scmp.le.s32.totalorder 1, %s16
      %p216 = scmp.lt.s32.totalorder %s16, 3
      %p217 = pnand %p215, %p216
      %p218 = pneg %p217
      // Predicated region
      $region29: #{tpu_custom_call.1} parent=5 // pred_check
        _
      $region30: #{tpu_custom_call.1} parent=5 // pred_check_branch
        %220 = sbr.rel (%p217) target = $region32
      $region31: #{tpu_custom_call.1} parent=5 // pred_region
        %s221 = ssub.s32 %s16, 1
        // Predicated region
        $region33: #{tpu_custom_call.1} parent=31 // pred_check
          %p222 = pneg %p63
        $region34: #{tpu_custom_call.1} parent=31 // pred_check_branch
          %224 = sbr.rel (%p222) target = $region36
        $region35: #{tpu_custom_call.1} parent=31 // pred_region
          %225 = dma.done [#allocation4], 7680
        $region36: #{tpu_custom_call.1} parent=31 // pred_fallthru
          _
        %s226 = sand.u32 %s78, 1
        %s227 = scalar_lea.sflag [#allocation7], %s226
        %s228 = sand.u32 %s78, 1
        %s229 = smul.addr %s228, 512
        %s230 = scalar_lea.vmem [#allocation6], %s229
        // Predicated region
        $region37: #{tpu_custom_call.1} parent=31 // pred_check
          %p231 = pneg %p91
        $region38: #{tpu_custom_call.1} parent=31 // pred_check_branch
          %233 = sbr.rel (%p231) target = $region40
        $region39: #{tpu_custom_call.1} parent=31 // pred_region
          %234 = dma.done %s227, 8192
        $region40: #{tpu_custom_call.1} parent=31 // pred_fallthru
          _
        %p235 = pneg %p63
        %p236 = pneg %p60
        %s237 = sand.u32 %s78, 1
        %s238 = scalar_lea.sflag [#allocation7], %s237
        %s239 = sand.u32 %s78, 1
        %s240 = smul.addr %s239, 512
        %s241 = scalar_lea.vmem [#allocation6], %s240
        %p242 = pneg %p91
        %p243 = pneg %p88
        %s244 = smul.u32 2, %s27
        %p245 = scmp.lt.s32.totalorder %s244, 3
        %s246 = scalar_select %p245, %s244, 3
        %s247 = scalar_lea.vmem %s2, %s246
        %p248 = pneg %p117
        %p249 = pneg %p114
        %p250 = pneg %p145
        %p251 = pneg %p142
        %s252 = sand.u32 %s132, 1
        %s253 = scalar_lea.sflag [#allocation5], %s252
        %s254 = sand.u32 %s132, 1
        %s255 = smul.addr %s254, 480
        %s256 = scalar_lea.vmem [#allocation8], %s255
        %s257 = smul.u32 30, %s26
        %s258 = smul.u32 4, %s28
        %s259 = smul.u32 64, %s28
        %s260 = smul.u32 2, %s27
        %s261 = smul.u32 2, %s27
        %p262 = scmp.lt.s32.totalorder %s261, 3
        %s263 = scalar_select %p262, %s261, 3
        %s264 = scalar_lea.vmem %s2, %s263
        %s265 = smul.u32 2, %s27
        %s266 = smul.u32 30, %s26
        %s267 = smul.u32 2, %s27
        %p268 = scmp.eq.s32.totalorder %s28, 0
        // Predicated region
        $region41: #{tpu_custom_call.1} parent=31 // pred_check
          %p269 = pneg %p268
        $region42: #{tpu_custom_call.1} parent=31 // pred_check_branch
          %271 = sbr.rel (%p269) target = $region44
        $region43: #{tpu_custom_call.1} parent=31 // pred_region
          %272 = vst [vmem:[#allocation2] sm:$0xff] 0.0
          %273 = vst [vmem:[#allocation2 + $0x8] sm:$0xff] 0.0
          %274 = vst [vmem:[#allocation2 + $0x10] sm:$0xff] 0.0
          %275 = vst [vmem:[#allocation2 + $0x18] sm:$0xff] 0.0
          %276 = vst [vmem:[#allocation2 + $0x20] sm:$0xff] 0.0
          %277 = vst [vmem:[#allocation2 + $0x28] sm:$0xff] 0.0
          %278 = vst [vmem:[#allocation2 + $0x30] sm:$0xff] 0.0
          %279 = vst [vmem:[#allocation2 + $0x38] sm:$0xff] 0.0
          %280 = vst [vmem:[#allocation2 + $0x40] sm:$0xff] 0.0
          %281 = vst [vmem:[#allocation2 + $0x48] sm:$0xff] 0.0
          %282 = vst [vmem:[#allocation2 + $0x50] sm:$0xff] 0.0
          %283 = vst [vmem:[#allocation2 + $0x58] sm:$0xff] 0.0
          %284 = vst [vmem:[#allocation2 + $0x60] sm:$0xff] 0.0
          %285 = vst [vmem:[#allocation2 + $0x68] sm:$0xff] 0.0
          %286 = vst [vmem:[#allocation2 + $0x70] sm:$0xff] 0.0
          %287 = vst [vmem:[#allocation2 + $0x78] sm:$0xff] 0.0
          %288 = vst [vmem:[#allocation2 + $0x80] sm:$0xff] 0.0
          %289 = vst [vmem:[#allocation2 + $0x88] sm:$0xff] 0.0
          %290 = vst [vmem:[#allocation2 + $0x90] sm:$0xff] 0.0
          %291 = vst [vmem:[#allocation2 + $0x98] sm:$0xff] 0.0
          %292 = vst [vmem:[#allocation2 + $0xa0] sm:$0xff] 0.0
          %293 = vst [vmem:[#allocation2 + $0xa8] sm:$0xff] 0.0
          %294 = vst [vmem:[#allocation2 + $0xb0] sm:$0xff] 0.0
          %295 = vst [vmem:[#allocation2 + $0xb8] sm:$0xff] 0.0
          %296 = vst [vmem:[#allocation2 + $0xc0] sm:$0xff] 0.0
          %297 = vst [vmem:[#allocation2 + $0xc8] sm:$0xff] 0.0
          %298 = vst [vmem:[#allocation2 + $0xd0] sm:$0xff] 0.0
          %299 = vst [vmem:[#allocation2 + $0xd8] sm:$0xff] 0.0
          %300 = vst [vmem:[#allocation2 + $0xe0] sm:$0xff] 0.0
          %301 = vst [vmem:[#allocation2 + $0xe8] sm:$0xff] 0.0
          %302 = vst [vmem:[#allocation2 + $0xf0] sm:$0xff] 0.0
          %303 = vst [vmem:[#allocation2 + $0xf8] sm:$0xff] 0.0
          %304 = vst [vmem:[#allocation2 + $0x100] sm:$0xff] 0.0
          %305 = vst [vmem:[#allocation2 + $0x108] sm:$0xff] 0.0
          %306 = vst [vmem:[#allocation2 + $0x110] sm:$0xff] 0.0
          %307 = vst [vmem:[#allocation2 + $0x118] sm:$0xff] 0.0
          %308 = vst [vmem:[#allocation2 + $0x120] sm:$0xff] 0.0
          %309 = vst [vmem:[#allocation2 + $0x128] sm:$0xff] 0.0
          %310 = vst [vmem:[#allocation2 + $0x130] sm:$0xff] 0.0
          %311 = vst [vmem:[#allocation2 + $0x138] sm:$0xff] 0.0
          %312 = vst [vmem:[#allocation2 + $0x140] sm:$0xff] 0.0
          %313 = vst [vmem:[#allocation2 + $0x148] sm:$0xff] 0.0
          %314 = vst [vmem:[#allocation2 + $0x150] sm:$0xff] 0.0
          %315 = vst [vmem:[#allocation2 + $0x158] sm:$0xff] 0.0
          %316 = vst [vmem:[#allocation2 + $0x160] sm:$0xff] 0.0
          %317 = vst [vmem:[#allocation2 + $0x168] sm:$0xff] 0.0
          %318 = vst [vmem:[#allocation2 + $0x170] sm:$0xff] 0.0
          %319 = vst [vmem:[#allocation2 + $0x178] sm:$0xff] 0.0
          %320 = vst [vmem:[#allocation2 + $0x180] sm:$0xff] 0.0
          %321 = vst [vmem:[#allocation2 + $0x188] sm:$0xff] 0.0
          %322 = vst [vmem:[#allocation2 + $0x190] sm:$0xff] 0.0
          %323 = vst [vmem:[#allocation2 + $0x198] sm:$0xff] 0.0
          %324 = vst [vmem:[#allocation2 + $0x1a0] sm:$0xff] 0.0
          %325 = vst [vmem:[#allocation2 + $0x1a8] sm:$0xff] 0.0
          %326 = vst [vmem:[#allocation2 + $0x1b0] sm:$0xff] 0.0
          %327 = vst [vmem:[#allocation2 + $0x1b8] sm:$0xff] 0.0
          %328 = vst [vmem:[#allocation2 + $0x1c0] sm:$0xff] 0.0
          %329 = vst [vmem:[#allocation2 + $0x1c8] sm:$0xff] 0.0
          %330 = vst [vmem:[#allocation2 + $0x1d0] sm:$0xff] 0.0
          %331 = vst [vmem:[#allocation2 + $0x1d8] sm:$0xff] 0.0
        $region44: #{tpu_custom_call.1} parent=31 // pred_fallthru
          _
        %v332 = vld [vmem:[#allocation2] sm:$0xff]
        %v333 = vld [vmem:[#allocation2 + $0x8] sm:$0xff]
        %v334 = vld [vmem:[#allocation2 + $0x10] sm:$0xff]
        %v335 = vld [vmem:[#allocation2 + $0x18] sm:$0xff]
        %v336 = vld [vmem:[#allocation2 + $0x20] sm:$0xff]
        %v337 = vld [vmem:[#allocation2 + $0x28] sm:$0xff]
        %v338 = vld [vmem:[#allocation2 + $0x30] sm:$0xff]
        %v339 = vld [vmem:[#allocation2 + $0x38] sm:$0xff]
        %v340 = vld [vmem:[#allocation2 + $0x40] sm:$0xff]
        %v341 = vld [vmem:[#allocation2 + $0x48] sm:$0xff]
        %v342 = vld [vmem:[#allocation2 + $0x50] sm:$0xff]
        %v343 = vld [vmem:[#allocation2 + $0x58] sm:$0xff]
        %v344 = vld [vmem:[#allocation2 + $0x60] sm:$0xff]
        %v345 = vld [vmem:[#allocation2 + $0x68] sm:$0xff]
        %v346 = vld [vmem:[#allocation2 + $0x70] sm:$0xff]
        %v347 = vld [vmem:[#allocation2 + $0x78] sm:$0xff]
        %v348 = vld [vmem:[#allocation2 + $0x80] sm:$0xff]
        %v349 = vld [vmem:[#allocation2 + $0x88] sm:$0xff]
        %v350 = vld [vmem:[#allocation2 + $0x90] sm:$0xff]
        %v351 = vld [vmem:[#allocation2 + $0x98] sm:$0xff]
        %v352 = vld [vmem:[#allocation2 + $0xa0] sm:$0xff]
        %v353 = vld [vmem:[#allocation2 + $0xa8] sm:$0xff]
        %v354 = vld [vmem:[#allocation2 + $0xb0] sm:$0xff]
        %v355 = vld [vmem:[#allocation2 + $0xb8] sm:$0xff]
        %v356 = vld [vmem:[#allocation2 + $0xc0] sm:$0xff]
        %v357 = vld [vmem:[#allocation2 + $0xc8] sm:$0xff]
        %v358 = vld [vmem:[#allocation2 + $0xd0] sm:$0xff]
        %v359 = vld [vmem:[#allocation2 + $0xd8] sm:$0xff]
        %v360 = vld [vmem:[#allocation2 + $0xe0] sm:$0xff]
        %v361 = vld [vmem:[#allocation2 + $0xe8] sm:$0xff]
        %v362 = vld [vmem:[#allocation2 + $0xf0] sm:$0xff]
        %v363 = vld [vmem:[#allocation2 + $0xf8] sm:$0xff]
        %v364 = vld [vmem:[#allocation2 + $0x100] sm:$0xff]
        %v365 = vld [vmem:[#allocation2 + $0x108] sm:$0xff]
        %v366 = vld [vmem:[#allocation2 + $0x110] sm:$0xff]
        %v367 = vld [vmem:[#allocation2 + $0x118] sm:$0xff]
        %v368 = vld [vmem:[#allocation2 + $0x120] sm:$0xff]
        %v369 = vld [vmem:[#allocation2 + $0x128] sm:$0xff]
        %v370 = vld [vmem:[#allocation2 + $0x130] sm:$0xff]
        %v371 = vld [vmem:[#allocation2 + $0x138] sm:$0xff]
        %v372 = vld [vmem:[#allocation2 + $0x140] sm:$0xff]
        %v373 = vld [vmem:[#allocation2 + $0x148] sm:$0xff]
        %v374 = vld [vmem:[#allocation2 + $0x150] sm:$0xff]
        %v375 = vld [vmem:[#allocation2 + $0x158] sm:$0xff]
        %v376 = vld [vmem:[#allocation2 + $0x160] sm:$0xff]
        %v377 = vld [vmem:[#allocation2 + $0x168] sm:$0xff]
        %v378 = vld [vmem:[#allocation2 + $0x170] sm:$0xff]
        %v379 = vld [vmem:[#allocation2 + $0x178] sm:$0xff]
        %v380 = vld [vmem:[#allocation2 + $0x180] sm:$0xff]
        %v381 = vld [vmem:[#allocation2 + $0x188] sm:$0xff]
        %v382 = vld [vmem:[#allocation2 + $0x190] sm:$0xff]
        %v383 = vld [vmem:[#allocation2 + $0x198] sm:$0xff]
        %v384 = vld [vmem:[#allocation2 + $0x1a0] sm:$0xff]
        %v385 = vld [vmem:[#allocation2 + $0x1a8] sm:$0xff]
        %v386 = vld [vmem:[#allocation2 + $0x1b0] sm:$0xff]
        %v387 = vld [vmem:[#allocation2 + $0x1b8] sm:$0xff]
        %v388 = vld [vmem:[#allocation2 + $0x1c0] sm:$0xff]
        %v389 = vld [vmem:[#allocation2 + $0x1c8] sm:$0xff]
        %v390 = vld [vmem:[#allocation2 + $0x1d0] sm:$0xff]
        %v391 = vld [vmem:[#allocation2 + $0x1d8] sm:$0xff]
        %v392 = vld [vmem:[#allocation3] sm:$0xff]
        %v393 = vld [vmem:[#allocation3 + $0x8] sm:$0xff]
        %v394 = vld [vmem:[#allocation3 + $0x10] sm:$0xff]
        %v395 = vld [vmem:[#allocation3 + $0x18] sm:$0xff]
        %v396 = vld [vmem:[#allocation3 + $0x20] sm:$0xff]
        %v397 = vld [vmem:[#allocation3 + $0x28] sm:$0xff]
        %v398 = vld [vmem:[#allocation3 + $0x30] sm:$0xff]
        %v399 = vld [vmem:[#allocation3 + $0x38] sm:$0xff]
        %v400 = vld [vmem:[#allocation3 + $0x40] sm:$0xff]
        %v401 = vld [vmem:[#allocation3 + $0x48] sm:$0xff]
        %v402 = vld [vmem:[#allocation3 + $0x50] sm:$0xff]
        %v403 = vld [vmem:[#allocation3 + $0x58] sm:$0xff]
        %v404 = vld [vmem:[#allocation3 + $0x60] sm:$0xff]
        %v405 = vld [vmem:[#allocation3 + $0x68] sm:$0xff]
        %v406 = vld [vmem:[#allocation3 + $0x70] sm:$0xff]
        %v407 = vld [vmem:[#allocation3 + $0x78] sm:$0xff]
        %v408 = vld [vmem:[#allocation3 + $0x80] sm:$0xff]
        %v409 = vld [vmem:[#allocation3 + $0x88] sm:$0xff]
        %v410 = vld [vmem:[#allocation3 + $0x90] sm:$0xff]
        %v411 = vld [vmem:[#allocation3 + $0x98] sm:$0xff]
        %v412 = vld [vmem:[#allocation3 + $0xa0] sm:$0xff]
        %v413 = vld [vmem:[#allocation3 + $0xa8] sm:$0xff]
        %v414 = vld [vmem:[#allocation3 + $0xb0] sm:$0xff]
        %v415 = vld [vmem:[#allocation3 + $0xb8] sm:$0xff]
        %v416 = vld [vmem:[#allocation3 + $0xc0] sm:$0xff]
        %v417 = vld [vmem:[#allocation3 + $0xc8] sm:$0xff]
        %v418 = vld [vmem:[#allocation3 + $0xd0] sm:$0xff]
        %v419 = vld [vmem:[#allocation3 + $0xd8] sm:$0xff]
        %v420 = vld [vmem:[#allocation3 + $0xe0] sm:$0xff]
        %v421 = vld [vmem:[#allocation3 + $0xe8] sm:$0xff]
        %v422 = vld [vmem:[#allocation3 + $0xf0] sm:$0xff]
        %v423 = vld [vmem:[#allocation3 + $0xf8] sm:$0xff]
        %v424 = vld [vmem:[#allocation3 + $0x100] sm:$0xff]
        %v425 = vld [vmem:[#allocation3 + $0x108] sm:$0xff]
        %v426 = vld [vmem:[#allocation3 + $0x110] sm:$0xff]
        %v427 = vld [vmem:[#allocation3 + $0x118] sm:$0xff]
        %v428 = vld [vmem:[#allocation3 + $0x120] sm:$0xff]
        %v429 = vld [vmem:[#allocation3 + $0x128] sm:$0xff]
        %v430 = vld [vmem:[#allocation3 + $0x130] sm:$0xff]
        %v431 = vld [vmem:[#allocation3 + $0x138] sm:$0xff]
        %v432 = vld [vmem:[#allocation3 + $0x140] sm:$0xff]
        %v433 = vld [vmem:[#allocation3 + $0x148] sm:$0xff]
        %v434 = vld [vmem:[#allocation3 + $0x150] sm:$0xff]
        %v435 = vld [vmem:[#allocation3 + $0x158] sm:$0xff]
        %v436 = vld [vmem:[#allocation3 + $0x160] sm:$0xff]
        %v437 = vld [vmem:[#allocation3 + $0x168] sm:$0xff]
        %v438 = vld [vmem:[#allocation3 + $0x170] sm:$0xff]
        %v439 = vld [vmem:[#allocation3 + $0x178] sm:$0xff]
        %v440 = vld [vmem:[#allocation3 + $0x180] sm:$0xff]
        %v441 = vld [vmem:[#allocation3 + $0x188] sm:$0xff]
        %v442 = vld [vmem:[#allocation3 + $0x190] sm:$0xff]
        %v443 = vld [vmem:[#allocation3 + $0x198] sm:$0xff]
        %v444 = vld [vmem:[#allocation3 + $0x1a0] sm:$0xff]
        %v445 = vld [vmem:[#allocation3 + $0x1a8] sm:$0xff]
        %v446 = vld [vmem:[#allocation3 + $0x1b0] sm:$0xff]
        %v447 = vld [vmem:[#allocation3 + $0x1b8] sm:$0xff]
        %v448 = vld [vmem:[#allocation3 + $0x1c0] sm:$0xff]
        %v449 = vld [vmem:[#allocation3 + $0x1c8] sm:$0xff]
        %v450 = vld [vmem:[#allocation3 + $0x1d0] sm:$0xff]
        %v451 = vld [vmem:[#allocation3 + $0x1d8] sm:$0xff]
        %v452 = vld [vmem:[%s230] sm:$0xff]
        %v453 = vld [vmem:[%s230 + $0x8] sm:$0xff]
        %v454 = vld [vmem:[%s230 + $0x10] sm:$0xff]
        %v455 = vld [vmem:[%s230 + $0x18] sm:$0xff]
        %v456 = vld [vmem:[%s230 + $0x20] sm:$0xff]
        %v457 = vld [vmem:[%s230 + $0x28] sm:$0xff]
        %v458 = vld [vmem:[%s230 + $0x30] sm:$0xff]
        %v459 = vld [vmem:[%s230 + $0x38] sm:$0xff]
        %v460 = vld [vmem:[%s230 + $0x40] sm:$0xff]
        %v461 = vld [vmem:[%s230 + $0x48] sm:$0xff]
        %v462 = vld [vmem:[%s230 + $0x50] sm:$0xff]
        %v463 = vld [vmem:[%s230 + $0x58] sm:$0xff]
        %v464 = vld [vmem:[%s230 + $0x60] sm:$0xff]
        %v465 = vld [vmem:[%s230 + $0x68] sm:$0xff]
        %v466 = vld [vmem:[%s230 + $0x70] sm:$0xff]
        %v467 = vld [vmem:[%s230 + $0x78] sm:$0xff]
        %v468 = vld [vmem:[%s230 + $0x80] sm:$0xff]
        %v469 = vld [vmem:[%s230 + $0x88] sm:$0xff]
        %v470 = vld [vmem:[%s230 + $0x90] sm:$0xff]
        %v471 = vld [vmem:[%s230 + $0x98] sm:$0xff]
        %v472 = vld [vmem:[%s230 + $0xa0] sm:$0xff]
        %v473 = vld [vmem:[%s230 + $0xa8] sm:$0xff]
        %v474 = vld [vmem:[%s230 + $0xb0] sm:$0xff]
        %v475 = vld [vmem:[%s230 + $0xb8] sm:$0xff]
        %v476 = vld [vmem:[%s230 + $0xc0] sm:$0xff]
        %v477 = vld [vmem:[%s230 + $0xc8] sm:$0xff]
        %v478 = vld [vmem:[%s230 + $0xd0] sm:$0xff]
        %v479 = vld [vmem:[%s230 + $0xd8] sm:$0xff]
        %v480 = vld [vmem:[%s230 + $0xe0] sm:$0xff]
        %v481 = vld [vmem:[%s230 + $0xe8] sm:$0xff]
        %v482 = vld [vmem:[%s230 + $0xf0] sm:$0xff]
        %v483 = vld [vmem:[%s230 + $0xf8] sm:$0xff]
        %v484 = vld [vmem:[%s230 + $0x100] sm:$0xff]
        %v485 = vld [vmem:[%s230 + $0x108] sm:$0xff]
        %v486 = vld [vmem:[%s230 + $0x110] sm:$0xff]
        %v487 = vld [vmem:[%s230 + $0x118] sm:$0xff]
        %v488 = vld [vmem:[%s230 + $0x120] sm:$0xff]
        %v489 = vld [vmem:[%s230 + $0x128] sm:$0xff]
        %v490 = vld [vmem:[%s230 + $0x130] sm:$0xff]
        %v491 = vld [vmem:[%s230 + $0x138] sm:$0xff]
        %v492 = vld [vmem:[%s230 + $0x140] sm:$0xff]
        %v493 = vld [vmem:[%s230 + $0x148] sm:$0xff]
        %v494 = vld [vmem:[%s230 + $0x150] sm:$0xff]
        %v495 = vld [vmem:[%s230 + $0x158] sm:$0xff]
        %v496 = vld [vmem:[%s230 + $0x160] sm:$0xff]
        %v497 = vld [vmem:[%s230 + $0x168] sm:$0xff]
        %v498 = vld [vmem:[%s230 + $0x170] sm:$0xff]
        %v499 = vld [vmem:[%s230 + $0x178] sm:$0xff]
        %v500 = vld [vmem:[%s230 + $0x180] sm:$0xff]
        %v501 = vld [vmem:[%s230 + $0x188] sm:$0xff]
        %v502 = vld [vmem:[%s230 + $0x190] sm:$0xff]
        %v503 = vld [vmem:[%s230 + $0x198] sm:$0xff]
        %v504 = vld [vmem:[%s230 + $0x1a0] sm:$0xff]
        %v505 = vld [vmem:[%s230 + $0x1a8] sm:$0xff]
        %v506 = vld [vmem:[%s230 + $0x1b0] sm:$0xff]
        %v507 = vld [vmem:[%s230 + $0x1b8] sm:$0xff]
        %v508 = vld [vmem:[%s230 + $0x1c0] sm:$0xff]
        %v509 = vld [vmem:[%s230 + $0x1c8] sm:$0xff]
        %v510 = vld [vmem:[%s230 + $0x1d0] sm:$0xff]
        %v511 = vld [vmem:[%s230 + $0x1d8] sm:$0xff]
        %v512 = vld [vmem:[%s230 + $0x1e0] sm:$0xff]
        %v513 = vld [vmem:[%s230 + $0x1e8] sm:$0xff]
        %v514 = vld [vmem:[%s230 + $0x1f0] sm:$0xff]
        %v515 = vld [vmem:[%s230 + $0x1f8] sm:$0xff]
        %v576 = vunpack.c.l.b16 %v392
        %v577 = vunpack.c.h.b16 %v392
        %v578 = vunpack.c.l.b16 %v393
        %v579 = vunpack.c.h.b16 %v393
        %v580 = vunpack.c.l.b16 %v394
        %v581 = vunpack.c.h.b16 %v394
        %v582 = vunpack.c.l.b16 %v395
        %v583 = vunpack.c.h.b16 %v395
        %v584 = vunpack.c.l.b16 %v396
        %v585 = vunpack.c.h.b16 %v396
        %v586 = vunpack.c.l.b16 %v397
        %v587 = vunpack.c.h.b16 %v397
        %v588 = vunpack.c.l.b16 %v398
        %v589 = vunpack.c.h.b16 %v398
        %v590 = vunpack.c.l.b16 %v399
        %v591 = vunpack.c.h.b16 %v399
        %v592 = vunpack.c.l.b16 %v400
        %v593 = vunpack.c.h.b16 %v400
        %v594 = vunpack.c.l.b16 %v401
        %v595 = vunpack.c.h.b16 %v401
        %v596 = vunpack.c.l.b16 %v402
        %v597 = vunpack.c.h.b16 %v402
        %v598 = vunpack.c.l.b16 %v403
        %v599 = vunpack.c.h.b16 %v403
        %v600 = vunpack.c.l.b16 %v404
        %v601 = vunpack.c.h.b16 %v404
        %v602 = vunpack.c.l.b16 %v405
        %v603 = vunpack.c.h.b16 %v405
        %v604 = vunpack.c.l.b16 %v406
        %v605 = vunpack.c.h.b16 %v406
        %v606 = vunpack.c.l.b16 %v407
        %v607 = vunpack.c.h.b16 %v407
        %v608 = vunpack.c.l.b16 %v408
        %v609 = vunpack.c.h.b16 %v408
        %v610 = vunpack.c.l.b16 %v409
        %v611 = vunpack.c.h.b16 %v409
        %v612 = vunpack.c.l.b16 %v410
        %v613 = vunpack.c.h.b16 %v410
        %v614 = vunpack.c.l.b16 %v411
        %v615 = vunpack.c.h.b16 %v411
        %v616 = vunpack.c.l.b16 %v412
        %v617 = vunpack.c.h.b16 %v412
        %v618 = vunpack.c.l.b16 %v413
        %v619 = vunpack.c.h.b16 %v413
        %v620 = vunpack.c.l.b16 %v414
        %v621 = vunpack.c.h.b16 %v414
        %v622 = vunpack.c.l.b16 %v415
        %v623 = vunpack.c.h.b16 %v415
        %v624 = vunpack.c.l.b16 %v416
        %v625 = vunpack.c.h.b16 %v416
        %v626 = vunpack.c.l.b16 %v417
        %v627 = vunpack.c.h.b16 %v417
        %v628 = vunpack.c.l.b16 %v418
        %v629 = vunpack.c.h.b16 %v418
        %v630 = vunpack.c.l.b16 %v419
        %v631 = vunpack.c.h.b16 %v419
        %v632 = vunpack.c.l.b16 %v420
        %v633 = vunpack.c.h.b16 %v420
        %v634 = vunpack.c.l.b16 %v421
        %v635 = vunpack.c.h.b16 %v421
        %v636 = vunpack.c.l.b16 %v422
        %v637 = vunpack.c.h.b16 %v422
        %v638 = vunpack.c.l.b16 %v423
        %v639 = vunpack.c.h.b16 %v423
        %v640 = vunpack.c.l.b16 %v424
        %v641 = vunpack.c.h.b16 %v424
        %v642 = vunpack.c.l.b16 %v425
        %v643 = vunpack.c.h.b16 %v425
        %v644 = vunpack.c.l.b16 %v426
        %v645 = vunpack.c.h.b16 %v426
        %v646 = vunpack.c.l.b16 %v427
        %v647 = vunpack.c.h.b16 %v427
        %v648 = vunpack.c.l.b16 %v428
        %v649 = vunpack.c.h.b16 %v428
        %v650 = vunpack.c.l.b16 %v429
        %v651 = vunpack.c.h.b16 %v429
        %v652 = vunpack.c.l.b16 %v430
        %v653 = vunpack.c.h.b16 %v430
        %v654 = vunpack.c.l.b16 %v431
        %v655 = vunpack.c.h.b16 %v431
        %v656 = vunpack.c.l.b16 %v432
        %v657 = vunpack.c.h.b16 %v432
        %v658 = vunpack.c.l.b16 %v433
        %v659 = vunpack.c.h.b16 %v433
        %v660 = vunpack.c.l.b16 %v434
        %v661 = vunpack.c.h.b16 %v434
        %v662 = vunpack.c.l.b16 %v435
        %v663 = vunpack.c.h.b16 %v435
        %v664 = vunpack.c.l.b16 %v436
        %v665 = vunpack.c.h.b16 %v436
        %v666 = vunpack.c.l.b16 %v437
        %v667 = vunpack.c.h.b16 %v437
        %v668 = vunpack.c.l.b16 %v438
        %v669 = vunpack.c.h.b16 %v438
        %v670 = vunpack.c.l.b16 %v439
        %v671 = vunpack.c.h.b16 %v439
        %v672 = vunpack.c.l.b16 %v440
        %v673 = vunpack.c.h.b16 %v440
        %v674 = vunpack.c.l.b16 %v441
        %v675 = vunpack.c.h.b16 %v441
        %v676 = vunpack.c.l.b16 %v442
        %v677 = vunpack.c.h.b16 %v442
        %v678 = vunpack.c.l.b16 %v443
        %v679 = vunpack.c.h.b16 %v443
        %v680 = vunpack.c.l.b16 %v444
        %v681 = vunpack.c.h.b16 %v444
        %v682 = vunpack.c.l.b16 %v445
        %v683 = vunpack.c.h.b16 %v445
        %v684 = vunpack.c.l.b16 %v446
        %v685 = vunpack.c.h.b16 %v446
        %v686 = vunpack.c.l.b16 %v447
        %v687 = vunpack.c.h.b16 %v447
        %v688 = vunpack.c.l.b16 %v448
        %v689 = vunpack.c.h.b16 %v448
        %v690 = vunpack.c.l.b16 %v449
        %v691 = vunpack.c.h.b16 %v449
        %v692 = vunpack.c.l.b16 %v450
        %v693 = vunpack.c.h.b16 %v450
        %v694 = vunpack.c.l.b16 %v451
        %v695 = vunpack.c.h.b16 %v451
        %v696 = vpack.c.b16 %v580, %v576
        %v697 = vpack.c.b16 %v581, %v577
        %v698 = vpack.c.b16 %v582, %v578
        %v699 = vpack.c.b16 %v583, %v579
        %v700 = vpack.c.b16 %v588, %v584
        %v701 = vpack.c.b16 %v589, %v585
        %v702 = vpack.c.b16 %v590, %v586
        %v703 = vpack.c.b16 %v591, %v587
        %v704 = vpack.c.b16 %v596, %v592
        %v705 = vpack.c.b16 %v597, %v593
        %v706 = vpack.c.b16 %v598, %v594
        %v707 = vpack.c.b16 %v599, %v595
        %v708 = vpack.c.b16 %v604, %v600
        %v709 = vpack.c.b16 %v605, %v601
        %v710 = vpack.c.b16 %v606, %v602
        %v711 = vpack.c.b16 %v607, %v603
        %v712 = vpack.c.b16 %v612, %v608
        %v713 = vpack.c.b16 %v613, %v609
        %v714 = vpack.c.b16 %v614, %v610
        %v715 = vpack.c.b16 %v615, %v611
        %v716 = vpack.c.b16 %v620, %v616
        %v717 = vpack.c.b16 %v621, %v617
        %v718 = vpack.c.b16 %v622, %v618
        %v719 = vpack.c.b16 %v623, %v619
        %v720 = vpack.c.b16 %v628, %v624
        %v721 = vpack.c.b16 %v629, %v625
        %v722 = vpack.c.b16 %v630, %v626
        %v723 = vpack.c.b16 %v631, %v627
        %v724 = vpack.c.b16 %v636, %v632
        %v725 = vpack.c.b16 %v637, %v633
        %v726 = vpack.c.b16 %v638, %v634
        %v727 = vpack.c.b16 %v639, %v635
        %v728 = vpack.c.b16 %v644, %v640
        %v729 = vpack.c.b16 %v645, %v641
        %v730 = vpack.c.b16 %v646, %v642
        %v731 = vpack.c.b16 %v647, %v643
        %v732 = vpack.c.b16 %v652, %v648
        %v733 = vpack.c.b16 %v653, %v649
        %v734 = vpack.c.b16 %v654, %v650
        %v735 = vpack.c.b16 %v655, %v651
        %v736 = vpack.c.b16 %v660, %v656
        %v737 = vpack.c.b16 %v661, %v657
        %v738 = vpack.c.b16 %v662, %v658
        %v739 = vpack.c.b16 %v663, %v659
        %v740 = vpack.c.b16 %v668, %v664
        %v741 = vpack.c.b16 %v669, %v665
        %v742 = vpack.c.b16 %v670, %v666
        %v743 = vpack.c.b16 %v671, %v667
        %v744 = vpack.c.b16 %v676, %v672
        %v745 = vpack.c.b16 %v677, %v673
        %v746 = vpack.c.b16 %v678, %v674
        %v747 = vpack.c.b16 %v679, %v675
        %v748 = vpack.c.b16 %v684, %v680
        %v749 = vpack.c.b16 %v685, %v681
        %v750 = vpack.c.b16 %v686, %v682
        %v751 = vpack.c.b16 %v687, %v683
        %v752 = vpack.c.b16 %v692, %v688
        %v753 = vpack.c.b16 %v693, %v689
        %v754 = vpack.c.b16 %v694, %v690
        %v755 = vpack.c.b16 %v695, %v691
        %v880 = vunpack.c.l.b16 %v452
        %v881 = vunpack.c.h.b16 %v452
        %v882 = vunpack.c.l.b16 %v453
        %v883 = vunpack.c.h.b16 %v453
        %v884 = vunpack.c.l.b16 %v454
        %v885 = vunpack.c.h.b16 %v454
        %v886 = vunpack.c.l.b16 %v455
        %v887 = vunpack.c.h.b16 %v455
        %v888 = vunpack.c.l.b16 %v456
        %v889 = vunpack.c.h.b16 %v456
        %v890 = vunpack.c.l.b16 %v457
        %v891 = vunpack.c.h.b16 %v457
        %v892 = vunpack.c.l.b16 %v458
        %v893 = vunpack.c.h.b16 %v458
        %v894 = vunpack.c.l.b16 %v459
        %v895 = vunpack.c.h.b16 %v459
        %v896 = vunpack.c.l.b16 %v460
        %v897 = vunpack.c.h.b16 %v460
        %v898 = vunpack.c.l.b16 %v461
        %v899 = vunpack.c.h.b16 %v461
        %v900 = vunpack.c.l.b16 %v462
        %v901 = vunpack.c.h.b16 %v462
        %v902 = vunpack.c.l.b16 %v463
        %v903 = vunpack.c.h.b16 %v463
        %v904 = vunpack.c.l.b16 %v464
        %v905 = vunpack.c.h.b16 %v464
        %v906 = vunpack.c.l.b16 %v465
        %v907 = vunpack.c.h.b16 %v465
        %v908 = vunpack.c.l.b16 %v466
        %v909 = vunpack.c.h.b16 %v466
        %v910 = vunpack.c.l.b16 %v467
        %v911 = vunpack.c.h.b16 %v467
        %v912 = vunpack.c.l.b16 %v468
        %v913 = vunpack.c.h.b16 %v468
        %v914 = vunpack.c.l.b16 %v469
        %v915 = vunpack.c.h.b16 %v469
        %v916 = vunpack.c.l.b16 %v470
        %v917 = vunpack.c.h.b16 %v470
        %v918 = vunpack.c.l.b16 %v471
        %v919 = vunpack.c.h.b16 %v471
        %v920 = vunpack.c.l.b16 %v472
        %v921 = vunpack.c.h.b16 %v472
        %v922 = vunpack.c.l.b16 %v473
        %v923 = vunpack.c.h.b16 %v473
        %v924 = vunpack.c.l.b16 %v474
        %v925 = vunpack.c.h.b16 %v474
        %v926 = vunpack.c.l.b16 %v475
        %v927 = vunpack.c.h.b16 %v475
        %v928 = vunpack.c.l.b16 %v476
        %v929 = vunpack.c.h.b16 %v476
        %v930 = vunpack.c.l.b16 %v477
        %v931 = vunpack.c.h.b16 %v477
        %v932 = vunpack.c.l.b16 %v478
        %v933 = vunpack.c.h.b16 %v478
        %v934 = vunpack.c.l.b16 %v479
        %v935 = vunpack.c.h.b16 %v479
        %v936 = vunpack.c.l.b16 %v480
        %v937 = vunpack.c.h.b16 %v480
        %v938 = vunpack.c.l.b16 %v481
        %v939 = vunpack.c.h.b16 %v481
        %v940 = vunpack.c.l.b16 %v482
        %v941 = vunpack.c.h.b16 %v482
        %v942 = vunpack.c.l.b16 %v483
        %v943 = vunpack.c.h.b16 %v483
        %v944 = vunpack.c.l.b16 %v484
        %v945 = vunpack.c.h.b16 %v484
        %v946 = vunpack.c.l.b16 %v485
        %v947 = vunpack.c.h.b16 %v485
        %v948 = vunpack.c.l.b16 %v486
        %v949 = vunpack.c.h.b16 %v486
        %v950 = vunpack.c.l.b16 %v487
        %v951 = vunpack.c.h.b16 %v487
        %v952 = vunpack.c.l.b16 %v488
        %v953 = vunpack.c.h.b16 %v488
        %v954 = vunpack.c.l.b16 %v489
        %v955 = vunpack.c.h.b16 %v489
        %v956 = vunpack.c.l.b16 %v490
        %v957 = vunpack.c.h.b16 %v490
        %v958 = vunpack.c.l.b16 %v491
        %v959 = vunpack.c.h.b16 %v491
        %v960 = vunpack.c.l.b16 %v492
        %v961 = vunpack.c.h.b16 %v492
        %v962 = vunpack.c.l.b16 %v493
        %v963 = vunpack.c.h.b16 %v493
        %v964 = vunpack.c.l.b16 %v494
        %v965 = vunpack.c.h.b16 %v494
        %v966 = vunpack.c.l.b16 %v495
        %v967 = vunpack.c.h.b16 %v495
        %v968 = vunpack.c.l.b16 %v496
        %v969 = vunpack.c.h.b16 %v496
        %v970 = vunpack.c.l.b16 %v497
        %v971 = vunpack.c.h.b16 %v497
        %v972 = vunpack.c.l.b16 %v498
        %v973 = vunpack.c.h.b16 %v498
        %v974 = vunpack.c.l.b16 %v499
        %v975 = vunpack.c.h.b16 %v499
        %v976 = vunpack.c.l.b16 %v500
        %v977 = vunpack.c.h.b16 %v500
        %v978 = vunpack.c.l.b16 %v501
        %v979 = vunpack.c.h.b16 %v501
        %v980 = vunpack.c.l.b16 %v502
        %v981 = vunpack.c.h.b16 %v502
        %v982 = vunpack.c.l.b16 %v503
        %v983 = vunpack.c.h.b16 %v503
        %v984 = vunpack.c.l.b16 %v504
        %v985 = vunpack.c.h.b16 %v504
        %v986 = vunpack.c.l.b16 %v505
        %v987 = vunpack.c.h.b16 %v505
        %v988 = vunpack.c.l.b16 %v506
        %v989 = vunpack.c.h.b16 %v506
        %v990 = vunpack.c.l.b16 %v507
        %v991 = vunpack.c.h.b16 %v507
        %v992 = vunpack.c.l.b16 %v508
        %v993 = vunpack.c.h.b16 %v508
        %v994 = vunpack.c.l.b16 %v509
        %v995 = vunpack.c.h.b16 %v509
        %v996 = vunpack.c.l.b16 %v510
        %v997 = vunpack.c.h.b16 %v510
        %v998 = vunpack.c.l.b16 %v511
        %v999 = vunpack.c.h.b16 %v511
        %v1000 = vunpack.c.l.b16 %v512
        %v1001 = vunpack.c.h.b16 %v512
        %v1002 = vunpack.c.l.b16 %v513
        %v1003 = vunpack.c.h.b16 %v513
        %v1004 = vunpack.c.l.b16 %v514
        %v1005 = vunpack.c.h.b16 %v514
        %v1006 = vunpack.c.l.b16 %v515
        %v1007 = vunpack.c.h.b16 %v515
        %v1008 = vpack.c.b16 %v882, %v880
        %v1009 = vpack.c.b16 %v883, %v881
        %v1010 = vpack.c.b16 %v886, %v884
        %v1011 = vpack.c.b16 %v887, %v885
        %v1012 = vpack.c.b16 %v890, %v888
        %v1013 = vpack.c.b16 %v891, %v889
        %v1014 = vpack.c.b16 %v894, %v892
        %v1015 = vpack.c.b16 %v895, %v893
        %v1016 = vpack.c.b16 %v898, %v896
        %v1017 = vpack.c.b16 %v899, %v897
        %v1018 = vpack.c.b16 %v902, %v900
        %v1019 = vpack.c.b16 %v903, %v901
        %v1020 = vpack.c.b16 %v906, %v904
        %v1021 = vpack.c.b16 %v907, %v905
        %v1022 = vpack.c.b16 %v910, %v908
        %v1023 = vpack.c.b16 %v911, %v909
        %v1024 = vpack.c.b16 %v914, %v912
        %v1025 = vpack.c.b16 %v915, %v913
        %v1026 = vpack.c.b16 %v918, %v916
        %v1027 = vpack.c.b16 %v919, %v917
        %v1028 = vpack.c.b16 %v922, %v920
        %v1029 = vpack.c.b16 %v923, %v921
        %v1030 = vpack.c.b16 %v926, %v924
        %v1031 = vpack.c.b16 %v927, %v925
        %v1032 = vpack.c.b16 %v930, %v928
        %v1033 = vpack.c.b16 %v931, %v929
        %v1034 = vpack.c.b16 %v934, %v932
        %v1035 = vpack.c.b16 %v935, %v933
        %v1036 = vpack.c.b16 %v938, %v936
        %v1037 = vpack.c.b16 %v939, %v937
        %v1038 = vpack.c.b16 %v942, %v940
        %v1039 = vpack.c.b16 %v943, %v941
        %v1040 = vpack.c.b16 %v946, %v944
        %v1041 = vpack.c.b16 %v947, %v945
        %v1042 = vpack.c.b16 %v950, %v948
        %v1043 = vpack.c.b16 %v951, %v949
        %v1044 = vpack.c.b16 %v954, %v952
        %v1045 = vpack.c.b16 %v955, %v953
        %v1046 = vpack.c.b16 %v958, %v956
        %v1047 = vpack.c.b16 %v959, %v957
        %v1048 = vpack.c.b16 %v962, %v960
        %v1049 = vpack.c.b16 %v963, %v961
        %v1050 = vpack.c.b16 %v966, %v964
        %v1051 = vpack.c.b16 %v967, %v965
        %v1052 = vpack.c.b16 %v970, %v968
        %v1053 = vpack.c.b16 %v971, %v969
        %v1054 = vpack.c.b16 %v974, %v972
        %v1055 = vpack.c.b16 %v975, %v973
        %v1056 = vpack.c.b16 %v978, %v976
        %v1057 = vpack.c.b16 %v979, %v977
        %v1058 = vpack.c.b16 %v982, %v980
        %v1059 = vpack.c.b16 %v983, %v981
        %v1060 = vpack.c.b16 %v986, %v984
        %v1061 = vpack.c.b16 %v987, %v985
        %v1062 = vpack.c.b16 %v990, %v988
        %v1063 = vpack.c.b16 %v991, %v989
        %v1064 = vpack.c.b16 %v994, %v992
        %v1065 = vpack.c.b16 %v995, %v993
        %v1066 = vpack.c.b16 %v998, %v996
        %v1067 = vpack.c.b16 %v999, %v997
        %v1068 = vpack.c.b16 %v1002, %v1000
        %v1069 = vpack.c.b16 %v1003, %v1001
        %v1070 = vpack.c.b16 %v1006, %v1004
        %v1071 = vpack.c.b16 %v1007, %v1005
        %1136 = vmatprep.subr.bf16.mxu0 %v1009
        %1137 = vmatpush1.bf16.msra.mxu0 %v1008
        %1138 = vmatprep.subr.bf16.mxu0 %v1011
        %1139 = vmatpush1.bf16.msra.mxu0 %v1010
        %1140 = vmatprep.subr.bf16.mxu0 %v1013
        %1141 = vmatpush1.bf16.msra.mxu0 %v1012
        %1142 = vmatprep.subr.bf16.mxu0 %v1015
        %1143 = vmatpush1.bf16.msra.mxu0 %v1014
        %1144 = vmatprep.subr.bf16.mxu0 %v1017
        %1145 = vmatpush1.bf16.msra.mxu0 %v1016
        %1146 = vmatprep.subr.bf16.mxu0 %v1019
        %1147 = vmatpush1.bf16.msra.mxu0 %v1018
        %1148 = vmatprep.subr.bf16.mxu0 %v1021
        %1149 = vmatpush1.bf16.msra.mxu0 %v1020
        %1150 = vmatprep.subr.bf16.mxu0 %v1023
        %1151 = vmatpush1.bf16.msra.mxu0 %v1022
        %1152 = vmatprep.subr.bf16.mxu0 %v1025
        %1153 = vmatpush1.bf16.msra.mxu0 %v1024
        %1154 = vmatprep.subr.bf16.mxu0 %v1027
        %1155 = vmatpush1.bf16.msra.mxu0 %v1026
        %1156 = vmatprep.subr.bf16.mxu0 %v1029
        %1157 = vmatpush1.bf16.msra.mxu0 %v1028
        %1158 = vmatprep.subr.bf16.mxu0 %v1031
        %1159 = vmatpush1.bf16.msra.mxu0 %v1030
        %1160 = vmatprep.subr.bf16.mxu0 %v1033
        %1161 = vmatpush1.bf16.msra.mxu0 %v1032
        %1162 = vmatprep.subr.bf16.mxu0 %v1035
        %1163 = vmatpush1.bf16.msra.mxu0 %v1034
        %1164 = vmatprep.subr.bf16.mxu0 %v1037
        %1165 = vmatpush1.bf16.msra.mxu0 %v1036
        %1166 = vmatprep.subr.bf16.mxu0 %v1039
        %1167 = vmatpush1.bf16.msra.mxu0 %v1038
        %1168 = vmatprep.mubr.bf16.mxu0 %v697
        %1169 = vmatmul.mubr.bf16.gmra.mrb[0].mxu0 %v696
        %v1170 = vpop.f32.mrb[0].mxu0
        %v1171 = vadd.f32 0.0, %v1170
        %v1172 = vpop.f32.mrb[0].mxu0
        %v1173 = vadd.f32 0.0, %v1172
        %v1174 = vpop.f32.mrb[0].mxu0
        %v1175 = vadd.f32 0.0, %v1174
        %v1176 = vpop.f32.mrb[0].mxu0
        %v1177 = vadd.f32 0.0, %v1176
        %1178 = vmatprep.mubr.bf16.mxu0 %v701
        %1179 = vmatmul.mubr.bf16.gmra.mrb[0].mxu0 %v700
        %v1180 = vpop.f32.mrb[0].mxu0
        %v1181 = vadd.f32 0.0, %v1180
        %v1182 = vpop.f32.mrb[0].mxu0
        %v1183 = vadd.f32 0.0, %v1182
        %v1184 = vpop.f32.mrb[0].mxu0
        %v1185 = vadd.f32 0.0, %v1184
        %v1186 = vpop.f32.mrb[0].mxu0
        %v1187 = vadd.f32 0.0, %v1186
        %1188 = vmatprep.mubr.bf16.mxu0 %v705
        %1189 = vmatmul.mubr.bf16.gmra.mrb[0].mxu0 %v704
        %v1190 = vpop.f32.mrb[0].mxu0
        %v1191 = vadd.f32 0.0, %v1190
        %v1192 = vpop.f32.mrb[0].mxu0
        %v1193 = vadd.f32 0.0, %v1192
        %v1194 = vpop.f32.mrb[0].mxu0
        %v1195 = vadd.f32 0.0, %v1194
        %v1196 = vpop.f32.mrb[0].mxu0
        %v1197 = vadd.f32 0.0, %v1196
        %1198 = vmatprep.mubr.bf16.mxu0 %v709
        %1199 = vmatmul.mubr.bf16.gmra.mrb[0].mxu0 %v708
        %v1200 = vpop.f32.mrb[0].mxu0
        %v1201 = vadd.f32 0.0, %v1200
        %v1202 = vpop.f32.mrb[0].mxu0
        %v1203 = vadd.f32 0.0, %v1202
        %v1204 = vpop.f32.mrb[0].mxu0
        %v1205 = vadd.f32 0.0, %v1204
        %v1206 = vpop.f32.mrb[0].mxu0
        %v1207 = vadd.f32 0.0, %v1206
        %1208 = vmatprep.mubr.bf16.mxu0 %v713
        %1209 = vmatmul.mubr.bf16.gmra.mrb[0].mxu0 %v712
        %v1210 = vpop.f32.mrb[0].mxu0
        %v1211 = vadd.f32 0.0, %v1210
        %v1212 = vpop.f32.mrb[0].mxu0
        %v1213 = vadd.f32 0.0, %v1212
        %v1214 = vpop.f32.mrb[0].mxu0
        %v1215 = vadd.f32 0.0, %v1214
        %v1216 = vpop.f32.mrb[0].mxu0
        %v1217 = vadd.f32 0.0, %v1216
        %1218 = vmatprep.mubr.bf16.mxu0 %v717
        %1219 = vmatmul.mubr.bf16.gmra.mrb[0].mxu0 %v716
        %v1220 = vpop.f32.mrb[0].mxu0
        %v1221 = vadd.f32 0.0, %v1220
        %v1222 = vpop.f32.mrb[0].mxu0
        %v1223 = vadd.f32 0.0, %v1222
        %v1224 = vpop.f32.mrb[0].mxu0
        %v1225 = vadd.f32 0.0, %v1224
        %v1226 = vpop.f32.mrb[0].mxu0
        %v1227 = vadd.f32 0.0, %v1226
        %1228 = vmatprep.mubr.bf16.mxu0 %v721
        %1229 = vmatmul.mubr.bf16.gmra.mrb[0].mxu0 %v720
        %v1230 = vpop.f32.mrb[0].mxu0
        %v1231 = vadd.f32 0.0, %v1230
        %v1232 = vpop.f32.mrb[0].mxu0
        %v1233 = vadd.f32 0.0, %v1232
        %v1234 = vpop.f32.mrb[0].mxu0
        %v1235 = vadd.f32 0.0, %v1234
        %v1236 = vpop.f32.mrb[0].mxu0
        %v1237 = vadd.f32 0.0, %v1236
        %1238 = vmatprep.mubr.bf16.mxu0 %v725
        %1239 = vmatmul.mubr.bf16.gmra.mrb[0].mxu0 %v724
        %v1240 = vpop.f32.mrb[0].mxu0
        %v1241 = vadd.f32 0.0, %v1240
        %v1242 = vpop.f32.mrb[0].mxu0
        %v1243 = vadd.f32 0.0, %v1242
        %v1244 = vpop.f32.mrb[0].mxu0
        %v1245 = vadd.f32 0.0, %v1244
        %v1246 = vpop.f32.mrb[0].mxu0
        %v1247 = vadd.f32 0.0, %v1246
        %1248 = vmatprep.mubr.bf16.mxu0 %v729
        %1249 = vmatmul.mubr.bf16.gmra.mrb[0].mxu0 %v728
        %v1250 = vpop.f32.mrb[0].mxu0
        %v1251 = vadd.f32 0.0, %v1250
        %v1252 = vpop.f32.mrb[0].mxu0
        %v1253 = vadd.f32 0.0, %v1252
        %v1254 = vpop.f32.mrb[0].mxu0
        %v1255 = vadd.f32 0.0, %v1254
        %v1256 = vpop.f32.mrb[0].mxu0
        %v1257 = vadd.f32 0.0, %v1256
        %1258 = vmatprep.mubr.bf16.mxu0 %v733
        %1259 = vmatmul.mubr.bf16.gmra.mrb[0].mxu0 %v732
        %v1260 = vpop.f32.mrb[0].mxu0
        %v1261 = vadd.f32 0.0, %v1260
        %v1262 = vpop.f32.mrb[0].mxu0
        %v1263 = vadd.f32 0.0, %v1262
        %v1264 = vpop.f32.mrb[0].mxu0
        %v1265 = vadd.f32 0.0, %v1264
        %v1266 = vpop.f32.mrb[0].mxu0
        %v1267 = vadd.f32 0.0, %v1266
        %1268 = vmatprep.mubr.bf16.mxu0 %v737
        %1269 = vmatmul.mubr.bf16.gmra.mrb[0].mxu0 %v736
        %v1270 = vpop.f32.mrb[0].mxu0
        %v1271 = vadd.f32 0.0, %v1270
        %v1272 = vpop.f32.mrb[0].mxu0
        %v1273 = vadd.f32 0.0, %v1272
        %v1274 = vpop.f32.mrb[0].mxu0
        %v1275 = vadd.f32 0.0, %v1274
        %v1276 = vpop.f32.mrb[0].mxu0
        %v1277 = vadd.f32 0.0, %v1276
        %1278 = vmatprep.mubr.bf16.mxu0 %v741
        %1279 = vmatmul.mubr.bf16.gmra.mrb[0].mxu0 %v740
        %v1280 = vpop.f32.mrb[0].mxu0
        %v1281 = vadd.f32 0.0, %v1280
        %v1282 = vpop.f32.mrb[0].mxu0
        %v1283 = vadd.f32 0.0, %v1282
        %v1284 = vpop.f32.mrb[0].mxu0
        %v1285 = vadd.f32 0.0, %v1284
        %v1286 = vpop.f32.mrb[0].mxu0
        %v1287 = vadd.f32 0.0, %v1286
        %1288 = vmatprep.mubr.bf16.mxu0 %v745
        %1289 = vmatmul.mubr.bf16.gmra.mrb[0].mxu0 %v744
        %v1290 = vpop.f32.mrb[0].mxu0
        %v1291 = vadd.f32 0.0, %v1290
        %v1292 = vpop.f32.mrb[0].mxu0
        %v1293 = vadd.f32 0.0, %v1292
        %v1294 = vpop.f32.mrb[0].mxu0
        %v1295 = vadd.f32 0.0, %v1294
        %v1296 = vpop.f32.mrb[0].mxu0
        %v1297 = vadd.f32 0.0, %v1296
        %1298 = vmatprep.mubr.bf16.mxu0 %v749
        %1299 = vmatmul.mubr.bf16.gmra.mrb[0].mxu0 %v748
        %v1300 = vpop.f32.mrb[0].mxu0
        %v1301 = vadd.f32 0.0, %v1300
        %v1302 = vpop.f32.mrb[0].mxu0
        %v1303 = vadd.f32 0.0, %v1302
        %v1304 = vpop.f32.mrb[0].mxu0
        %v1305 = vadd.f32 0.0, %v1304
        %v1306 = vpop.f32.mrb[0].mxu0
        %v1307 = vadd.f32 0.0, %v1306
        %1308 = vmatprep.mubr.bf16.mxu0 %v753
        %1309 = vmatmul.mubr.bf16.gmra.mrb[0].mxu0 %v752
        %v1310 = vpop.f32.mrb[0].mxu0
        %v1311 = vadd.f32 0.0, %v1310
        %v1312 = vpop.f32.mrb[0].mxu0
        %v1313 = vadd.f32 0.0, %v1312
        %v1314 = vpop.f32.mrb[0].mxu0
        %v1315 = vadd.f32 0.0, %v1314
        %v1316 = vpop.f32.mrb[0].mxu0
        %v1317 = vadd.f32 0.0, %v1316
        %1318 = vdwg.mxu0
        %1319 = vmatprep.subr.bf16.mxu0 %v1041
        %1320 = vmatpush1.bf16.msra.mxu0 %v1040
        %1321 = vmatprep.subr.bf16.mxu0 %v1043
        %1322 = vmatpush1.bf16.msra.mxu0 %v1042
        %1323 = vmatprep.subr.bf16.mxu0 %v1045
        %1324 = vmatpush1.bf16.msra.mxu0 %v1044
        %1325 = vmatprep.subr.bf16.mxu0 %v1047
        %1326 = vmatpush1.bf16.msra.mxu0 %v1046
        %1327 = vmatprep.subr.bf16.mxu0 %v1049
        %1328 = vmatpush1.bf16.msra.mxu0 %v1048
        %1329 = vmatprep.subr.bf16.mxu0 %v1051
        %1330 = vmatpush1.bf16.msra.mxu0 %v1050
        %1331 = vmatprep.subr.bf16.mxu0 %v1053
        %1332 = vmatpush1.bf16.msra.mxu0 %v1052
        %1333 = vmatprep.subr.bf16.mxu0 %v1055
        %1334 = vmatpush1.bf16.msra.mxu0 %v1054
        %1335 = vmatprep.subr.bf16.mxu0 %v1057
        %1336 = vmatpush1.bf16.msra.mxu0 %v1056
        %1337 = vmatprep.subr.bf16.mxu0 %v1059
        %1338 = vmatpush1.bf16.msra.mxu0 %v1058
        %1339 = vmatprep.subr.bf16.mxu0 %v1061
        %1340 = vmatpush1.bf16.msra.mxu0 %v1060
        %1341 = vmatprep.subr.bf16.mxu0 %v1063
        %1342 = vmatpush1.bf16.msra.mxu0 %v1062
        %1343 = vmatprep.subr.bf16.mxu0 %v1065
        %1344 = vmatpush1.bf16.msra.mxu0 %v1064
        %1345 = vmatprep.subr.bf16.mxu0 %v1067
        %1346 = vmatpush1.bf16.msra.mxu0 %v1066
        %1347 = vmatprep.subr.bf16.mxu0 %v1069
        %1348 = vmatpush1.bf16.msra.mxu0 %v1068
        %1349 = vmatprep.subr.bf16.mxu0 %v1071
        %1350 = vmatpush1.bf16.msra.mxu0 %v1070
        %1351 = vmatprep.mubr.bf16.mxu0 %v699
        %1352 = vmatmul.mubr.bf16.gmra.mrb[0].mxu0 %v698
        %v1353 = vpop.f32.mrb[0].mxu0
        %v1354 = vadd.f32 %v1171, %v1353
        %v1355 = vpop.f32.mrb[0].mxu0
        %v1356 = vadd.f32 %v1173, %v1355
        %v1357 = vpop.f32.mrb[0].mxu0
        %v1358 = vadd.f32 %v1175, %v1357
        %v1359 = vpop.f32.mrb[0].mxu0
        %v1360 = vadd.f32 %v1177, %v1359
        %1361 = vmatprep.mubr.bf16.mxu0 %v703
        %1362 = vmatmul.mubr.bf16.gmra.mrb[0].mxu0 %v702
        %v1363 = vpop.f32.mrb[0].mxu0
        %v1364 = vadd.f32 %v1181, %v1363
        %v1365 = vpop.f32.mrb[0].mxu0
        %v1366 = vadd.f32 %v1183, %v1365
        %v1367 = vpop.f32.mrb[0].mxu0
        %v1368 = vadd.f32 %v1185, %v1367
        %v1369 = vpop.f32.mrb[0].mxu0
        %v1370 = vadd.f32 %v1187, %v1369
        %1371 = vmatprep.mubr.bf16.mxu0 %v707
        %1372 = vmatmul.mubr.bf16.gmra.mrb[0].mxu0 %v706
        %v1373 = vpop.f32.mrb[0].mxu0
        %v1374 = vadd.f32 %v1191, %v1373
        %v1375 = vpop.f32.mrb[0].mxu0
        %v1376 = vadd.f32 %v1193, %v1375
        %v1377 = vpop.f32.mrb[0].mxu0
        %v1378 = vadd.f32 %v1195, %v1377
        %v1379 = vpop.f32.mrb[0].mxu0
        %v1380 = vadd.f32 %v1197, %v1379
        %1381 = vmatprep.mubr.bf16.mxu0 %v711
        %1382 = vmatmul.mubr.bf16.gmra.mrb[0].mxu0 %v710
        %v1383 = vpop.f32.mrb[0].mxu0
        %v1384 = vadd.f32 %v1201, %v1383
        %v1385 = vpop.f32.mrb[0].mxu0
        %v1386 = vadd.f32 %v1203, %v1385
        %v1387 = vpop.f32.mrb[0].mxu0
        %v1388 = vadd.f32 %v1205, %v1387
        %v1389 = vpop.f32.mrb[0].mxu0
        %v1390 = vadd.f32 %v1207, %v1389
        %1391 = vmatprep.mubr.bf16.mxu0 %v715
        %1392 = vmatmul.mubr.bf16.gmra.mrb[0].mxu0 %v714
        %v1393 = vpop.f32.mrb[0].mxu0
        %v1394 = vadd.f32 %v1211, %v1393
        %v1395 = vpop.f32.mrb[0].mxu0
        %v1396 = vadd.f32 %v1213, %v1395
        %v1397 = vpop.f32.mrb[0].mxu0
        %v1398 = vadd.f32 %v1215, %v1397
        %v1399 = vpop.f32.mrb[0].mxu0
        %v1400 = vadd.f32 %v1217, %v1399
        %1401 = vmatprep.mubr.bf16.mxu0 %v719
        %1402 = vmatmul.mubr.bf16.gmra.mrb[0].mxu0 %v718
        %v1403 = vpop.f32.mrb[0].mxu0
        %v1404 = vadd.f32 %v1221, %v1403
        %v1405 = vpop.f32.mrb[0].mxu0
        %v1406 = vadd.f32 %v1223, %v1405
        %v1407 = vpop.f32.mrb[0].mxu0
        %v1408 = vadd.f32 %v1225, %v1407
        %v1409 = vpop.f32.mrb[0].mxu0
        %v1410 = vadd.f32 %v1227, %v1409
        %1411 = vmatprep.mubr.bf16.mxu0 %v723
        %1412 = vmatmul.mubr.bf16.gmra.mrb[0].mxu0 %v722
        %v1413 = vpop.f32.mrb[0].mxu0
        %v1414 = vadd.f32 %v1231, %v1413
        %v1415 = vpop.f32.mrb[0].mxu0
        %v1416 = vadd.f32 %v1233, %v1415
        %v1417 = vpop.f32.mrb[0].mxu0
        %v1418 = vadd.f32 %v1235, %v1417
        %v1419 = vpop.f32.mrb[0].mxu0
        %v1420 = vadd.f32 %v1237, %v1419
        %1421 = vmatprep.mubr.bf16.mxu0 %v727
        %1422 = vmatmul.mubr.bf16.gmra.mrb[0].mxu0 %v726
        %v1423 = vpop.f32.mrb[0].mxu0
        %v1424 = vadd.f32 %v1241, %v1423
        %v1425 = vpop.f32.mrb[0].mxu0
        %v1426 = vadd.f32 %v1243, %v1425
        %v1427 = vpop.f32.mrb[0].mxu0
        %v1428 = vadd.f32 %v1245, %v1427
        %v1429 = vpop.f32.mrb[0].mxu0
        %v1430 = vadd.f32 %v1247, %v1429
        %1431 = vmatprep.mubr.bf16.mxu0 %v731
        %1432 = vmatmul.mubr.bf16.gmra.mrb[0].mxu0 %v730
        %v1433 = vpop.f32.mrb[0].mxu0
        %v1434 = vadd.f32 %v1251, %v1433
        %v1435 = vpop.f32.mrb[0].mxu0
        %v1436 = vadd.f32 %v1253, %v1435
        %v1437 = vpop.f32.mrb[0].mxu0
        %v1438 = vadd.f32 %v1255, %v1437
        %v1439 = vpop.f32.mrb[0].mxu0
        %v1440 = vadd.f32 %v1257, %v1439
        %1441 = vmatprep.mubr.bf16.mxu0 %v735
        %1442 = vmatmul.mubr.bf16.gmra.mrb[0].mxu0 %v734
        %v1443 = vpop.f32.mrb[0].mxu0
        %v1444 = vadd.f32 %v1261, %v1443
        %v1445 = vpop.f32.mrb[0].mxu0
        %v1446 = vadd.f32 %v1263, %v1445
        %v1447 = vpop.f32.mrb[0].mxu0
        %v1448 = vadd.f32 %v1265, %v1447
        %v1449 = vpop.f32.mrb[0].mxu0
        %v1450 = vadd.f32 %v1267, %v1449
        %1451 = vmatprep.mubr.bf16.mxu0 %v739
        %1452 = vmatmul.mubr.bf16.gmra.mrb[0].mxu0 %v738
        %v1453 = vpop.f32.mrb[0].mxu0
        %v1454 = vadd.f32 %v1271, %v1453
        %v1455 = vpop.f32.mrb[0].mxu0
        %v1456 = vadd.f32 %v1273, %v1455
        %v1457 = vpop.f32.mrb[0].mxu0
        %v1458 = vadd.f32 %v1275, %v1457
        %v1459 = vpop.f32.mrb[0].mxu0
        %v1460 = vadd.f32 %v1277, %v1459
        %1461 = vmatprep.mubr.bf16.mxu0 %v743
        %1462 = vmatmul.mubr.bf16.gmra.mrb[0].mxu0 %v742
        %v1463 = vpop.f32.mrb[0].mxu0
        %v1464 = vadd.f32 %v1281, %v1463
        %v1465 = vpop.f32.mrb[0].mxu0
        %v1466 = vadd.f32 %v1283, %v1465
        %v1467 = vpop.f32.mrb[0].mxu0
        %v1468 = vadd.f32 %v1285, %v1467
        %v1469 = vpop.f32.mrb[0].mxu0
        %v1470 = vadd.f32 %v1287, %v1469
        %1471 = vmatprep.mubr.bf16.mxu0 %v747
        %1472 = vmatmul.mubr.bf16.gmra.mrb[0].mxu0 %v746
        %v1473 = vpop.f32.mrb[0].mxu0
        %v1474 = vadd.f32 %v1291, %v1473
        %v1475 = vpop.f32.mrb[0].mxu0
        %v1476 = vadd.f32 %v1293, %v1475
        %v1477 = vpop.f32.mrb[0].mxu0
        %v1478 = vadd.f32 %v1295, %v1477
        %v1479 = vpop.f32.mrb[0].mxu0
        %v1480 = vadd.f32 %v1297, %v1479
        %1481 = vmatprep.mubr.bf16.mxu0 %v751
        %1482 = vmatmul.mubr.bf16.gmra.mrb[0].mxu0 %v750
        %v1483 = vpop.f32.mrb[0].mxu0
        %v1484 = vadd.f32 %v1301, %v1483
        %v1485 = vpop.f32.mrb[0].mxu0
        %v1486 = vadd.f32 %v1303, %v1485
        %v1487 = vpop.f32.mrb[0].mxu0
        %v1488 = vadd.f32 %v1305, %v1487
        %v1489 = vpop.f32.mrb[0].mxu0
        %v1490 = vadd.f32 %v1307, %v1489
        %1491 = vmatprep.mubr.bf16.mxu0 %v755
        %1492 = vmatmul.mubr.bf16.gmra.mrb[0].mxu0 %v754
        %v1493 = vpop.f32.mrb[0].mxu0
        %v1494 = vadd.f32 %v1311, %v1493
        %v1495 = vpop.f32.mrb[0].mxu0
        %v1496 = vadd.f32 %v1313, %v1495
        %v1497 = vpop.f32.mrb[0].mxu0
        %v1498 = vadd.f32 %v1315, %v1497
        %v1499 = vpop.f32.mrb[0].mxu0
        %v1500 = vadd.f32 %v1317, %v1499
        %1501 = vdwg.mxu0
        %v1502 = vadd.f32 %v332, %v1354
        %v1503 = vadd.f32 %v333, %v1356
        %v1504 = vadd.f32 %v334, %v1358
        %v1505 = vadd.f32 %v335, %v1360
        %v1506 = vadd.f32 %v336, %v1364
        %v1507 = vadd.f32 %v337, %v1366
        %v1508 = vadd.f32 %v338, %v1368
        %v1509 = vadd.f32 %v339, %v1370
        %v1510 = vadd.f32 %v340, %v1374
        %v1511 = vadd.f32 %v341, %v1376
        %v1512 = vadd.f32 %v342, %v1378
        %v1513 = vadd.f32 %v343, %v1380
        %v1514 = vadd.f32 %v344, %v1384
        %v1515 = vadd.f32 %v345, %v1386
        %v1516 = vadd.f32 %v346, %v1388
        %v1517 = vadd.f32 %v347, %v1390
        %v1518 = vadd.f32 %v348, %v1394
        %v1519 = vadd.f32 %v349, %v1396
        %v1520 = vadd.f32 %v350, %v1398
        %v1521 = vadd.f32 %v351, %v1400
        %v1522 = vadd.f32 %v352, %v1404
        %v1523 = vadd.f32 %v353, %v1406
        %v1524 = vadd.f32 %v354, %v1408
        %v1525 = vadd.f32 %v355, %v1410
        %v1526 = vadd.f32 %v356, %v1414
        %v1527 = vadd.f32 %v357, %v1416
        %v1528 = vadd.f32 %v358, %v1418
        %v1529 = vadd.f32 %v359, %v1420
        %v1530 = vadd.f32 %v360, %v1424
        %v1531 = vadd.f32 %v361, %v1426
        %v1532 = vadd.f32 %v362, %v1428
        %v1533 = vadd.f32 %v363, %v1430
        %v1534 = vadd.f32 %v364, %v1434
        %v1535 = vadd.f32 %v365, %v1436
        %v1536 = vadd.f32 %v366, %v1438
        %v1537 = vadd.f32 %v367, %v1440
        %v1538 = vadd.f32 %v368, %v1444
        %v1539 = vadd.f32 %v369, %v1446
        %v1540 = vadd.f32 %v370, %v1448
        %v1541 = vadd.f32 %v371, %v1450
        %v1542 = vadd.f32 %v372, %v1454
        %v1543 = vadd.f32 %v373, %v1456
        %v1544 = vadd.f32 %v374, %v1458
        %v1545 = vadd.f32 %v375, %v1460
        %v1546 = vadd.f32 %v376, %v1464
        %v1547 = vadd.f32 %v377, %v1466
        %v1548 = vadd.f32 %v378, %v1468
        %v1549 = vadd.f32 %v379, %v1470
        %v1550 = vadd.f32 %v380, %v1474
        %v1551 = vadd.f32 %v381, %v1476
        %v1552 = vadd.f32 %v382, %v1478
        %v1553 = vadd.f32 %v383, %v1480
        %v1554 = vadd.f32 %v384, %v1484
        %v1555 = vadd.f32 %v385, %v1486
        %v1556 = vadd.f32 %v386, %v1488
        %v1557 = vadd.f32 %v387, %v1490
        %v1558 = vadd.f32 %v388, %v1494
        %v1559 = vadd.f32 %v389, %v1496
        %v1560 = vadd.f32 %v390, %v1498
        %v1561 = vadd.f32 %v391, %v1500
        %1562 = vst [vmem:[#allocation2] sm:$0xff] %v1502
        %1563 = vst [vmem:[#allocation2 + $0x8] sm:$0xff] %v1503
        %1564 = vst [vmem:[#allocation2 + $0x10] sm:$0xff] %v1504
        %1565 = vst [vmem:[#allocation2 + $0x18] sm:$0xff] %v1505
        %1566 = vst [vmem:[#allocation2 + $0x20] sm:$0xff] %v1506
        %1567 = vst [vmem:[#allocation2 + $0x28] sm:$0xff] %v1507
        %1568 = vst [vmem:[#allocation2 + $0x30] sm:$0xff] %v1508
        %1569 = vst [vmem:[#allocation2 + $0x38] sm:$0xff] %v1509
        %1570 = vst [vmem:[#allocation2 + $0x40] sm:$0xff] %v1510
        %1571 = vst [vmem:[#allocation2 + $0x48] sm:$0xff] %v1511
        %1572 = vst [vmem:[#allocation2 + $0x50] sm:$0xff] %v1512
        %1573 = vst [vmem:[#allocation2 + $0x58] sm:$0xff] %v1513
        %1574 = vst [vmem:[#allocation2 + $0x60] sm:$0xff] %v1514
        %1575 = vst [vmem:[#allocation2 + $0x68] sm:$0xff] %v1515
        %1576 = vst [vmem:[#allocation2 + $0x70] sm:$0xff] %v1516
        %1577 = vst [vmem:[#allocation2 + $0x78] sm:$0xff] %v1517
        %1578 = vst [vmem:[#allocation2 + $0x80] sm:$0xff] %v1518
        %1579 = vst [vmem:[#allocation2 + $0x88] sm:$0xff] %v1519
        %1580 = vst [vmem:[#allocation2 + $0x90] sm:$0xff] %v1520
        %1581 = vst [vmem:[#allocation2 + $0x98] sm:$0xff] %v1521
        %1582 = vst [vmem:[#allocation2 + $0xa0] sm:$0xff] %v1522
        %1583 = vst [vmem:[#allocation2 + $0xa8] sm:$0xff] %v1523
        %1584 = vst [vmem:[#allocation2 + $0xb0] sm:$0xff] %v1524
        %1585 = vst [vmem:[#allocation2 + $0xb8] sm:$0xff] %v1525
        %1586 = vst [vmem:[#allocation2 + $0xc0] sm:$0xff] %v1526
        %1587 = vst [vmem:[#allocation2 + $0xc8] sm:$0xff] %v1527
        %1588 = vst [vmem:[#allocation2 + $0xd0] sm:$0xff] %v1528
        %1589 = vst [vmem:[#allocation2 + $0xd8] sm:$0xff] %v1529
        %1590 = vst [vmem:[#allocation2 + $0xe0] sm:$0xff] %v1530
        %1591 = vst [vmem:[#allocation2 + $0xe8] sm:$0xff] %v1531
        %1592 = vst [vmem:[#allocation2 + $0xf0] sm:$0xff] %v1532
        %1593 = vst [vmem:[#allocation2 + $0xf8] sm:$0xff] %v1533
        %1594 = vst [vmem:[#allocation2 + $0x100] sm:$0xff] %v1534
        %1595 = vst [vmem:[#allocation2 + $0x108] sm:$0xff] %v1535
        %1596 = vst [vmem:[#allocation2 + $0x110] sm:$0xff] %v1536
        %1597 = vst [vmem:[#allocation2 + $0x118] sm:$0xff] %v1537
        %1598 = vst [vmem:[#allocation2 + $0x120] sm:$0xff] %v1538
        %1599 = vst [vmem:[#allocation2 + $0x128] sm:$0xff] %v1539
        %1600 = vst [vmem:[#allocation2 + $0x130] sm:$0xff] %v1540
        %1601 = vst [vmem:[#allocation2 + $0x138] sm:$0xff] %v1541
        %1602 = vst [vmem:[#allocation2 + $0x140] sm:$0xff] %v1542
        %1603 = vst [vmem:[#allocation2 + $0x148] sm:$0xff] %v1543
        %1604 = vst [vmem:[#allocation2 + $0x150] sm:$0xff] %v1544
        %1605 = vst [vmem:[#allocation2 + $0x158] sm:$0xff] %v1545
        %1606 = vst [vmem:[#allocation2 + $0x160] sm:$0xff] %v1546
        %1607 = vst [vmem:[#allocation2 + $0x168] sm:$0xff] %v1547
        %1608 = vst [vmem:[#allocation2 + $0x170] sm:$0xff] %v1548
        %1609 = vst [vmem:[#allocation2 + $0x178] sm:$0xff] %v1549
        %1610 = vst [vmem:[#allocation2 + $0x180] sm:$0xff] %v1550
        %1611 = vst [vmem:[#allocation2 + $0x188] sm:$0xff] %v1551
        %1612 = vst [vmem:[#allocation2 + $0x190] sm:$0xff] %v1552
        %1613 = vst [vmem:[#allocation2 + $0x198] sm:$0xff] %v1553
        %1614 = vst [vmem:[#allocation2 + $0x1a0] sm:$0xff] %v1554
        %1615 = vst [vmem:[#allocation2 + $0x1a8] sm:$0xff] %v1555
        %1616 = vst [vmem:[#allocation2 + $0x1b0] sm:$0xff] %v1556
        %1617 = vst [vmem:[#allocation2 + $0x1b8] sm:$0xff] %v1557
        %1618 = vst [vmem:[#allocation2 + $0x1c0] sm:$0xff] %v1558
        %1619 = vst [vmem:[#allocation2 + $0x1c8] sm:$0xff] %v1559
        %1620 = vst [vmem:[#allocation2 + $0x1d0] sm:$0xff] %v1560
        %1621 = vst [vmem:[#allocation2 + $0x1d8] sm:$0xff] %v1561
        // Predicated region
        $region45: #{tpu_custom_call.1} parent=31 // pred_check
          %p1622 = pneg %p268
        $region46: #{tpu_custom_call.1} parent=31 // pred_check_branch
          %1624 = sbr.rel (%p1622) target = $region48
        $region47: #{tpu_custom_call.1} parent=31 // pred_region
          %v1625 = vld [vmem:[#allocation2] sm:$0xff]
          %v1626 = vld [vmem:[#allocation2 + $0x8] sm:$0xff]
          %v1627 = vld [vmem:[#allocation2 + $0x10] sm:$0xff]
          %v1628 = vld [vmem:[#allocation2 + $0x18] sm:$0xff]
          %v1629 = vld [vmem:[#allocation2 + $0x20] sm:$0xff]
          %v1630 = vld [vmem:[#allocation2 + $0x28] sm:$0xff]
          %v1631 = vld [vmem:[#allocation2 + $0x30] sm:$0xff]
          %v1632 = vld [vmem:[#allocation2 + $0x38] sm:$0xff]
          %v1633 = vld [vmem:[#allocation2 + $0x40] sm:$0xff]
          %v1634 = vld [vmem:[#allocation2 + $0x48] sm:$0xff]
          %v1635 = vld [vmem:[#allocation2 + $0x50] sm:$0xff]
          %v1636 = vld [vmem:[#allocation2 + $0x58] sm:$0xff]
          %v1637 = vld [vmem:[#allocation2 + $0x60] sm:$0xff]
          %v1638 = vld [vmem:[#allocation2 + $0x68] sm:$0xff]
          %v1639 = vld [vmem:[#allocation2 + $0x70] sm:$0xff]
          %v1640 = vld [vmem:[#allocation2 + $0x78] sm:$0xff]
          %v1641 = vld [vmem:[#allocation2 + $0x80] sm:$0xff]
          %v1642 = vld [vmem:[#allocation2 + $0x88] sm:$0xff]
          %v1643 = vld [vmem:[#allocation2 + $0x90] sm:$0xff]
          %v1644 = vld [vmem:[#allocation2 + $0x98] sm:$0xff]
          %v1645 = vld [vmem:[#allocation2 + $0xa0] sm:$0xff]
          %v1646 = vld [vmem:[#allocation2 + $0xa8] sm:$0xff]
          %v1647 = vld [vmem:[#allocation2 + $0xb0] sm:$0xff]
          %v1648 = vld [vmem:[#allocation2 + $0xb8] sm:$0xff]
          %v1649 = vld [vmem:[#allocation2 + $0xc0] sm:$0xff]
          %v1650 = vld [vmem:[#allocation2 + $0xc8] sm:$0xff]
          %v1651 = vld [vmem:[#allocation2 + $0xd0] sm:$0xff]
          %v1652 = vld [vmem:[#allocation2 + $0xd8] sm:$0xff]
          %v1653 = vld [vmem:[#allocation2 + $0xe0] sm:$0xff]
          %v1654 = vld [vmem:[#allocation2 + $0xe8] sm:$0xff]
          %v1655 = vld [vmem:[#allocation2 + $0xf0] sm:$0xff]
          %v1656 = vld [vmem:[#allocation2 + $0xf8] sm:$0xff]
          %v1657 = vld [vmem:[#allocation2 + $0x100] sm:$0xff]
          %v1658 = vld [vmem:[#allocation2 + $0x108] sm:$0xff]
          %v1659 = vld [vmem:[#allocation2 + $0x110] sm:$0xff]
          %v1660 = vld [vmem:[#allocation2 + $0x118] sm:$0xff]
          %v1661 = vld [vmem:[#allocation2 + $0x120] sm:$0xff]
          %v1662 = vld [vmem:[#allocation2 + $0x128] sm:$0xff]
          %v1663 = vld [vmem:[#allocation2 + $0x130] sm:$0xff]
          %v1664 = vld [vmem:[#allocation2 + $0x138] sm:$0xff]
          %v1665 = vld [vmem:[#allocation2 + $0x140] sm:$0xff]
          %v1666 = vld [vmem:[#allocation2 + $0x148] sm:$0xff]
          %v1667 = vld [vmem:[#allocation2 + $0x150] sm:$0xff]
          %v1668 = vld [vmem:[#allocation2 + $0x158] sm:$0xff]
          %v1669 = vld [vmem:[#allocation2 + $0x160] sm:$0xff]
          %v1670 = vld [vmem:[#allocation2 + $0x168] sm:$0xff]
          %v1671 = vld [vmem:[#allocation2 + $0x170] sm:$0xff]
          %v1672 = vld [vmem:[#allocation2 + $0x178] sm:$0xff]
          %v1673 = vld [vmem:[#allocation2 + $0x180] sm:$0xff]
          %v1674 = vld [vmem:[#allocation2 + $0x188] sm:$0xff]
          %v1675 = vld [vmem:[#allocation2 + $0x190] sm:$0xff]
          %v1676 = vld [vmem:[#allocation2 + $0x198] sm:$0xff]
          %v1677 = vld [vmem:[#allocation2 + $0x1a0] sm:$0xff]
          %v1678 = vld [vmem:[#allocation2 + $0x1a8] sm:$0xff]
          %v1679 = vld [vmem:[#allocation2 + $0x1b0] sm:$0xff]
          %v1680 = vld [vmem:[#allocation2 + $0x1b8] sm:$0xff]
          %v1681 = vld [vmem:[#allocation2 + $0x1c0] sm:$0xff]
          %v1682 = vld [vmem:[#allocation2 + $0x1c8] sm:$0xff]
          %v1683 = vld [vmem:[#allocation2 + $0x1d0] sm:$0xff]
          %v1684 = vld [vmem:[#allocation2 + $0x1d8] sm:$0xff]
          %v1685 = vld [vmem:[%s264] sm:$0x3]
          %v1687 = vlaneseq
          %v1688 = vshrl.u32 %v1687, 7
          %v1689 = vsub.s32 0, %v1688
          %v1690 = vrot.slane %v1685, %v1689
          %v1691 = vlaneseq
          %v1692 = vshrl.u32 %v1691, 7
          %v1693 = vsub.s32 1, %v1692
          %v1694 = vrot.slane %v1685, %v1693
          %v1697 = vadd.f32 %v1625, %v1690
          %v1698 = vadd.f32 %v1626, %v1694
          %v1699 = vadd.f32 %v1627, %v1690
          %v1700 = vadd.f32 %v1628, %v1694
          %v1701 = vadd.f32 %v1629, %v1690
          %v1702 = vadd.f32 %v1630, %v1694
          %v1703 = vadd.f32 %v1631, %v1690
          %v1704 = vadd.f32 %v1632, %v1694
          %v1705 = vadd.f32 %v1633, %v1690
          %v1706 = vadd.f32 %v1634, %v1694
          %v1707 = vadd.f32 %v1635, %v1690
          %v1708 = vadd.f32 %v1636, %v1694
          %v1709 = vadd.f32 %v1637, %v1690
          %v1710 = vadd.f32 %v1638, %v1694
          %v1711 = vadd.f32 %v1639, %v1690
          %v1712 = vadd.f32 %v1640, %v1694
          %v1713 = vadd.f32 %v1641, %v1690
          %v1714 = vadd.f32 %v1642, %v1694
          %v1715 = vadd.f32 %v1643, %v1690
          %v1716 = vadd.f32 %v1644, %v1694
          %v1717 = vadd.f32 %v1645, %v1690
          %v1718 = vadd.f32 %v1646, %v1694
          %v1719 = vadd.f32 %v1647, %v1690
          %v1720 = vadd.f32 %v1648, %v1694
          %v1721 = vadd.f32 %v1649, %v1690
          %v1722 = vadd.f32 %v1650, %v1694
          %v1723 = vadd.f32 %v1651, %v1690
          %v1724 = vadd.f32 %v1652, %v1694
          %v1725 = vadd.f32 %v1653, %v1690
          %v1726 = vadd.f32 %v1654, %v1694
          %v1727 = vadd.f32 %v1655, %v1690
          %v1728 = vadd.f32 %v1656, %v1694
          %v1729 = vadd.f32 %v1657, %v1690
          %v1730 = vadd.f32 %v1658, %v1694
          %v1731 = vadd.f32 %v1659, %v1690
          %v1732 = vadd.f32 %v1660, %v1694
          %v1733 = vadd.f32 %v1661, %v1690
          %v1734 = vadd.f32 %v1662, %v1694
          %v1735 = vadd.f32 %v1663, %v1690
          %v1736 = vadd.f32 %v1664, %v1694
          %v1737 = vadd.f32 %v1665, %v1690
          %v1738 = vadd.f32 %v1666, %v1694
          %v1739 = vadd.f32 %v1667, %v1690
          %v1740 = vadd.f32 %v1668, %v1694
          %v1741 = vadd.f32 %v1669, %v1690
          %v1742 = vadd.f32 %v1670, %v1694
          %v1743 = vadd.f32 %v1671, %v1690
          %v1744 = vadd.f32 %v1672, %v1694
          %v1745 = vadd.f32 %v1673, %v1690
          %v1746 = vadd.f32 %v1674, %v1694
          %v1747 = vadd.f32 %v1675, %v1690
          %v1748 = vadd.f32 %v1676, %v1694
          %v1749 = vadd.f32 %v1677, %v1690
          %v1750 = vadd.f32 %v1678, %v1694
          %v1751 = vadd.f32 %v1679, %v1690
          %v1752 = vadd.f32 %v1680, %v1694
          %v1753 = vadd.f32 %v1681, %v1690
          %v1754 = vadd.f32 %v1682, %v1694
          %v1755 = vadd.f32 %v1683, %v1690
          %v1756 = vadd.f32 %v1684, %v1694
          %1757 = vst [vmem:[%s256] sm:$0xff] %v1697
          %1758 = vst [vmem:[%s256 + $0x8] sm:$0xff] %v1698
          %1759 = vst [vmem:[%s256 + $0x10] sm:$0xff] %v1699
          %1760 = vst [vmem:[%s256 + $0x18] sm:$0xff] %v1700
          %1761 = vst [vmem:[%s256 + $0x20] sm:$0xff] %v1701
          %1762 = vst [vmem:[%s256 + $0x28] sm:$0xff] %v1702
          %1763 = vst [vmem:[%s256 + $0x30] sm:$0xff] %v1703
          %1764 = vst [vmem:[%s256 + $0x38] sm:$0xff] %v1704
          %1765 = vst [vmem:[%s256 + $0x40] sm:$0xff] %v1705
          %1766 = vst [vmem:[%s256 + $0x48] sm:$0xff] %v1706
          %1767 = vst [vmem:[%s256 + $0x50] sm:$0xff] %v1707
          %1768 = vst [vmem:[%s256 + $0x58] sm:$0xff] %v1708
          %1769 = vst [vmem:[%s256 + $0x60] sm:$0xff] %v1709
          %1770 = vst [vmem:[%s256 + $0x68] sm:$0xff] %v1710
          %1771 = vst [vmem:[%s256 + $0x70] sm:$0xff] %v1711
          %1772 = vst [vmem:[%s256 + $0x78] sm:$0xff] %v1712
          %1773 = vst [vmem:[%s256 + $0x80] sm:$0xff] %v1713
          %1774 = vst [vmem:[%s256 + $0x88] sm:$0xff] %v1714
          %1775 = vst [vmem:[%s256 + $0x90] sm:$0xff] %v1715
          %1776 = vst [vmem:[%s256 + $0x98] sm:$0xff] %v1716
          %1777 = vst [vmem:[%s256 + $0xa0] sm:$0xff] %v1717
          %1778 = vst [vmem:[%s256 + $0xa8] sm:$0xff] %v1718
          %1779 = vst [vmem:[%s256 + $0xb0] sm:$0xff] %v1719
          %1780 = vst [vmem:[%s256 + $0xb8] sm:$0xff] %v1720
          %1781 = vst [vmem:[%s256 + $0xc0] sm:$0xff] %v1721
          %1782 = vst [vmem:[%s256 + $0xc8] sm:$0xff] %v1722
          %1783 = vst [vmem:[%s256 + $0xd0] sm:$0xff] %v1723
          %1784 = vst [vmem:[%s256 + $0xd8] sm:$0xff] %v1724
          %1785 = vst [vmem:[%s256 + $0xe0] sm:$0xff] %v1725
          %1786 = vst [vmem:[%s256 + $0xe8] sm:$0xff] %v1726
          %1787 = vst [vmem:[%s256 + $0xf0] sm:$0xff] %v1727
          %1788 = vst [vmem:[%s256 + $0xf8] sm:$0xff] %v1728
          %1789 = vst [vmem:[%s256 + $0x100] sm:$0xff] %v1729
          %1790 = vst [vmem:[%s256 + $0x108] sm:$0xff] %v1730
          %1791 = vst [vmem:[%s256 + $0x110] sm:$0xff] %v1731
          %1792 = vst [vmem:[%s256 + $0x118] sm:$0xff] %v1732
          %1793 = vst [vmem:[%s256 + $0x120] sm:$0xff] %v1733
          %1794 = vst [vmem:[%s256 + $0x128] sm:$0xff] %v1734
          %1795 = vst [vmem:[%s256 + $0x130] sm:$0xff] %v1735
          %1796 = vst [vmem:[%s256 + $0x138] sm:$0xff] %v1736
          %1797 = vst [vmem:[%s256 + $0x140] sm:$0xff] %v1737
          %1798 = vst [vmem:[%s256 + $0x148] sm:$0xff] %v1738
          %1799 = vst [vmem:[%s256 + $0x150] sm:$0xff] %v1739
          %1800 = vst [vmem:[%s256 + $0x158] sm:$0xff] %v1740
          %1801 = vst [vmem:[%s256 + $0x160] sm:$0xff] %v1741
          %1802 = vst [vmem:[%s256 + $0x168] sm:$0xff] %v1742
          %1803 = vst [vmem:[%s256 + $0x170] sm:$0xff] %v1743
          %1804 = vst [vmem:[%s256 + $0x178] sm:$0xff] %v1744
          %1805 = vst [vmem:[%s256 + $0x180] sm:$0xff] %v1745
          %1806 = vst [vmem:[%s256 + $0x188] sm:$0xff] %v1746
          %1807 = vst [vmem:[%s256 + $0x190] sm:$0xff] %v1747
          %1808 = vst [vmem:[%s256 + $0x198] sm:$0xff] %v1748
          %1809 = vst [vmem:[%s256 + $0x1a0] sm:$0xff] %v1749
          %1810 = vst [vmem:[%s256 + $0x1a8] sm:$0xff] %v1750
          %1811 = vst [vmem:[%s256 + $0x1b0] sm:$0xff] %v1751
          %1812 = vst [vmem:[%s256 + $0x1b8] sm:$0xff] %v1752
          %1813 = vst [vmem:[%s256 + $0x1c0] sm:$0xff] %v1753
          %1814 = vst [vmem:[%s256 + $0x1c8] sm:$0xff] %v1754
          %1815 = vst [vmem:[%s256 + $0x1d0] sm:$0xff] %v1755
          %1816 = vst [vmem:[%s256 + $0x1d8] sm:$0xff] %v1756
        $region48: #{tpu_custom_call.1} parent=31 // pred_fallthru
          _
        %s1817 = sand.u32 %s132, 1
        %s1818 = scalar_lea.sflag [#allocation5], %s1817
        %s1819 = sand.u32 %s132, 1
        %s1820 = smul.addr %s1819, 480
        %s1821 = scalar_lea.vmem [#allocation8], %s1820
        // Predicated region
        $region49: #{tpu_custom_call.1} parent=31 // pred_check
          %p1822 = pneg %p142
        $region50: #{tpu_custom_call.1} parent=31 // pred_check_branch
          %1824 = sbr.rel (%p1822) target = $region52
        $region51: #{tpu_custom_call.1} parent=31 // pred_region
          %s1825 = smul.u32 30, %s26
          %s1826 = smul.u32 2, %s27
          %s1828 = ssub.s32 7680, 7680
          %1829 = vsyncadd %s1818, %s1828
          %s1830 = smul.addr %s1825, 4
          %s1831 = sadd.s32 %s1826, %s1830
          %s1832 = smul.addr %s1831, 128
          %s1833 = scalar_lea.hbm %s3, %s1832
          %s1834 = sshll.u32 %s1821, 4
          %s1835 = int_to_ptr.vmem [resolvable:$true] %s1834
          %1840 = dma.vmem_to_hbm [thread:$0]  %s1835, 7680, %s1833, %s1818, 256, 512, 16
        $region52: #{tpu_custom_call.1} parent=31 // pred_fallthru
          _
      $region32: #{tpu_custom_call.1} parent=5 // pred_fallthru
        _
      %p1841 = scmp.le.s32.totalorder 2, %s16
      // Predicated region
      $region53: #{tpu_custom_call.1} parent=5 // pred_check
        %p1842 = pneg %p1841
      $region54: #{tpu_custom_call.1} parent=5 // pred_check_branch
        %1844 = sbr.rel (%p1842) target = $region56
      $region55: #{tpu_custom_call.1} parent=5 // pred_region
        %s1845 = ssub.s32 %s16, 2
        // Predicated region
        $region57: #{tpu_custom_call.1} parent=55 // pred_check
          %p1846 = pneg %p148
        $region58: #{tpu_custom_call.1} parent=55 // pred_check_branch
          %1848 = sbr.rel (%p1846) target = $region60
        $region59: #{tpu_custom_call.1} parent=55 // pred_region
          %s1849 = sand.u32 %s133, 1
          %s1850 = scalar_lea.sflag [#allocation5], %s1849
          %s1851 = sand.u32 %s133, 1
          %s1852 = smul.addr %s1851, 480
          %s1853 = scalar_lea.vmem [#allocation8], %s1852
          %1854 = dma.done %s1850, 7680
        $region60: #{tpu_custom_call.1} parent=55 // pred_fallthru
          _
      $region56: #{tpu_custom_call.1} parent=5 // pred_fallthru
        _
    $region6: #{tpu_custom_call.1} parent=1 // loop_footer
      %s20 = sadd.s32 1, %s16
    $region7: #{tpu_custom_call.1} parent=1 // loop_footer_branch
      %15 = sbr.rel target = $region3
    $region8: #{tpu_custom_call.1} parent=1 // loop_exit
      _
    %1855 = vsyncpa [#allocation4], 1
    %s1856 = scalar_lea.sflag [#allocation4], 1
    %1857 = vsyncpa %s1856, 1
    %1858 = vsyncpa [#allocation7], 1
    %s1859 = scalar_lea.sflag [#allocation7], 1
    %1860 = vsyncpa %s1859, 1
    %1861 = vsyncpa [#allocation5], 1
    %s1862 = scalar_lea.sflag [#allocation5], 1
    %1863 = vsyncpa %s1862, 1

</llo_original>
